<compile_context>
chip_gen: v7x
topology: tpu7x:2x2x1
jax: 0.10.0
libtpu: 0.0.40
codegen_flags: <defaults>
</compile_context>

<pallas_src>
import functools

import jax
import jax.numpy as jnp
from jax import lax
from jax.experimental import pallas as pl
from jax.experimental.pallas import tpu as pltpu

F32 = jnp.float32
BF16 = jnp.bfloat16


# --------------------------------------------------------------------------------------
# small math helpers (used both inside kernels and in the pure-JAX reference / glue)
# --------------------------------------------------------------------------------------
def _layer_norm(x, gamma, beta, eps):
    mean = jnp.mean(x, axis=-1, keepdims=True)
    var = jnp.mean(jnp.square(x - mean), axis=-1, keepdims=True)
    return (x - mean) * jax.lax.rsqrt(var + eps) * gamma + beta


def _gelu_tanh(x):
    # matches torch.nn.functional.gelu(..., approximate='tanh')
    c = jnp.float32(0.7978845608028654)  # sqrt(2/pi)
    return 0.5 * x * (1.0 + jnp.tanh(c * (x + 0.044715 * x * x * x)))


def _pick_vmem_limit():
    """Per-generation scoped-VMEM budget (trace-time, python-level)."""
    kind = ""
    try:
        kind = jax.devices()[0].device_kind.lower()
    except Exception:
        pass
    if "v7" in kind:
        return 44 * 1024 * 1024        # stay well under v7x's 64 MiB physical VMEM
    if "v6" in kind or "v5" in kind:
        return 100 * 1024 * 1024       # use the 128 MiB VMEM on v5e / v6e
    return 32 * 1024 * 1024            # conservative default for unknown chips


def _const_spec(shape):
    """BlockSpec for a block identical at every grid step (weights / biases / LN)."""
    idx = lambda *_: (0,) * len(shape)
    if hasattr(pl, "Buffered"):
        # constant blocks never change -> single-buffer to halve resident weight VMEM
        return pl.BlockSpec(shape, idx, pipeline_mode=pl.Buffered(1))
    return pl.BlockSpec(shape, idx)


# --------------------------------------------------------------------------------------
# Fused DecoderLayer kernel
#   grid = (batch, seq_tiles); seq axis is "arbitrary" (Q/K/V scratch carries across it)
#   at s == 0: LN1 over the full sequence + ONE fused (D,3D) QKV matmul -> VMEM scratch
#   every (b, s): attention (per-head scores, single full-width Wo matmul) + residual
#                 + LN2 + full MLP (no I streaming) + residual
# --------------------------------------------------------------------------------------
def _decoder_layer_kernel(xf_ref, x_ref, ln1g_ref, ln1b_ref,
                          wqkv_ref, bqkv_ref, wo_ref, bo_ref,
                          ln2g_ref, ln2b_ref, w1_ref, b1_ref, w2_ref, b2_ref,
                          out_ref, q_sc, k_sc, v_sc,
                          *, num_heads, head_dim, eps, scale, seq_tile):
    s_idx = pl.program_id(1)
    D = num_heads * head_dim

    @pl.when(s_idx == 0)
    def _qkv_full_sequence():
        xn = _layer_norm(xf_ref[0], ln1g_ref[0], ln1b_ref[0], eps).astype(BF16)
        qkv = jnp.dot(xn, wqkv_ref[...], preferred_element_type=F32) + bqkv_ref[0]
        q_sc[...] = (qkv[:, :D] * scale).astype(BF16)      # fold 1/sqrt(hd) into Q once
        k_sc[...] = qkv[:, D:2 * D].astype(BF16)
        v_sc[...] = qkv[:, 2 * D:].astype(BF16)

    # ---- attention for this seq tile ----
    row0 = pl.multiple_of(s_idx * seq_tile, seq_tile)
    q = q_sc[pl.ds(row0, seq_tile), :]                      # (TS, D) bf16, pre-scaled
    ctx = []
    for h in range(num_heads):                              # static unroll, small H
        lo = h * head_dim
        qh = q[:, lo:lo + head_dim]
        kh = k_sc[:, lo:lo + head_dim]
        vh = v_sc[:, lo:lo + head_dim]
        # q @ k^T with the transpose folded into the MXU contraction (no XLU transpose)
        s = lax.dot_general(qh, kh, (((1,), (1,)), ((), ())),
                            preferred_element_type=F32)     # (TS, S)
        s = s - jnp.max(s, axis=-1, keepdims=True)
        p = jnp.exp(s)
        p = p * pl.reciprocal(jnp.sum(p, axis=-1, keepdims=True), approx=True)
        ctx.append(jnp.dot(p.astype(BF16), vh, preferred_element_type=F32))  # (TS, hd)
    # single full-width out-projection (contraction = D) instead of H small matmuls
    ctx = jnp.concatenate(ctx, axis=-1).astype(BF16)        # (TS, D)
    attn = jnp.dot(ctx, wo_ref[...], preferred_element_type=F32) + bo_ref[0]

    h1 = x_ref[0] + attn                                    # residual 1 (f32)
    hn = _layer_norm(h1, ln2g_ref[0], ln2b_ref[0], eps).astype(BF16)

    # ---- MLP in one shot (W1/W2 fully resident in VMEM) ----
    m = jnp.dot(hn, w1_ref[...], preferred_element_type=F32) + b1_ref[0]
    m = _gelu_tanh(m)
    out = h1 + jnp.dot(m.astype(BF16), w2_ref[...], preferred_element_type=F32) + b2_ref[0]
    out_ref[0] = out.astype(out_ref.dtype)


# --------------------------------------------------------------------------------------
# post LayerNorm + predictor Linear
# --------------------------------------------------------------------------------------
def _ln_linear_kernel(x_ref, g_ref, b_ref, w_ref, wb_ref, out_ref, *, eps):
    xn = _layer_norm(x_ref[0], g_ref[0], b_ref[0], eps).astype(BF16)
    out_ref[0] = (jnp.dot(xn, w_ref[...], preferred_element_type=F32)
                  + wb_ref[0]).astype(out_ref.dtype)


# --------------------------------------------------------------------------------------
# wrappers
# --------------------------------------------------------------------------------------
def decoder_layer(x, p, *, num_heads, eps, seq_tile, vmem_limit):
    B, S, D = x.shape
    head_dim = D // num_heads
    scale = float(head_dim) ** -0.5
    I = p["w1"].shape[1]
    TS = min(seq_tile, S)
    assert S % TS == 0 and (TS % 8 == 0 or TS == S), "bad seq tile"
    n_s = S // TS

    kernel = functools.partial(_decoder_layer_kernel, num_heads=num_heads,
                               head_dim=head_dim, eps=eps, scale=scale, seq_tile=TS)

    return pl.pallas_call(
        kernel,
        out_shape=jax.ShapeDtypeStruct((B, S, D), x.dtype),
        grid_spec=pltpu.PrefetchScalarGridSpec(
            num_scalar_prefetch=0,
            grid=(B, n_s),
            in_specs=[
                pl.BlockSpec((1, S, D), lambda b, s: (b, 0, 0)),    # full-seq x (QKV @ s==0)
                pl.BlockSpec((1, TS, D), lambda b, s: (b, s, 0)),   # residual x tile
                _const_spec((1, D)), _const_spec((1, D)),           # ln1 gamma / beta
                _const_spec((D, 3 * D)), _const_spec((1, 3 * D)),   # fused Wqkv / bqkv
                _const_spec((D, D)), _const_spec((1, D)),           # Wo / bo
                _const_spec((1, D)), _const_spec((1, D)),           # ln2 gamma / beta
                _const_spec((D, I)), _const_spec((1, I)),           # W1 / b1 (full I)
                _const_spec((I, D)), _const_spec((1, D)),           # W2 / b2
            ],
            out_specs=pl.BlockSpec((1, TS, D), lambda b, s: (b, s, 0)),
            scratch_shapes=[
                pltpu.VMEM((S, D), BF16),    # Q (pre-scaled), full sequence
                pltpu.VMEM((S, D), BF16),    # K, full sequence
                pltpu.VMEM((S, D), BF16),    # V, full sequence
            ],
        ),
        compiler_params=pltpu.CompilerParams(
            # seq axis must stay "arbitrary": Q/K/V scratch carries state across it.
            dimension_semantics=("parallel", "arbitrary"),
            vmem_limit_bytes=vmem_limit),
    )(x, x, p["ln1_g"], p["ln1_b"], p["wqkv"], p["bqkv"],
      p["wo"], p["bo"], p["ln2_g"], p["ln2_b"],
      p["w1"], p["b1"], p["w2"], p["b2"])


def post_ln_predictor(x, p, *, eps, seq_tile, vmem_limit):
    B, S, D = x.shape
    P = p["pred_w"].shape[1]
    TS = min(seq_tile, S)
    assert S % TS == 0 and (TS % 8 == 0 or TS == S)
    return pl.pallas_call(
        functools.partial(_ln_linear_kernel, eps=eps),
        out_shape=jax.ShapeDtypeStruct((B, S, P), x.dtype),
        grid_spec=pltpu.PrefetchScalarGridSpec(
            num_scalar_prefetch=0,
            grid=(B, S // TS),
            in_specs=[
                pl.BlockSpec((1, TS, D), lambda b, s: (b, s, 0)),
                _const_spec((1, D)), _const_spec((1, D)),          # post-LN gamma / beta
                _const_spec((D, P)), _const_spec((1, P)),          # predictor W, b
            ],
            out_specs=pl.BlockSpec((1, TS, P), lambda b, s: (b, s, 0)),
        ),
        compiler_params=pltpu.CompilerParams(
            dimension_semantics=("parallel", "parallel"),
            vmem_limit_bytes=vmem_limit),
    )(x, p["post_ln_g"], p["post_ln_b"], p["pred_w"], p["pred_b"])


def reconstruct_sequence(encoded, ids_restore, p, *, eps, project):
    # plain-JAX glue: projector Linear+LN, mask-token concat, data-dependent un-shuffle
    t = encoded
    if project:
        t = t @ p["proj_w"] + p["proj_b"]
        t = _layer_norm(t, p["proj_ln_g"], p["proj_ln_b"], eps)
    B, S_enc, D = t.shape
    n_mask = ids_restore.shape[1] - S_enc
    mask_tok = jnp.broadcast_to(p["mask_token"].astype(t.dtype), (B, n_mask, D))
    full = jnp.concatenate([t, mask_tok], axis=1)
    idx = jnp.broadcast_to(ids_restore[:, :, None], full.shape)
    return jnp.take_along_axis(full, idx, axis=1)


def decoder_forward(encoded, mask, ids_restore, kp, *, cfg, seq_tile):
    del mask  # the reference Decoder.forward never uses the mask
    eps = cfg["layer_norm_eps"]
    project = cfg["in_proj_dim"] != cfg["hidden_size"]
    vmem_limit = _pick_vmem_limit()
    # NOTE: position_embedding is declared in the module but never applied in forward.
    x = reconstruct_sequence(encoded, ids_restore, kp, eps=eps, project=project)
    for lp in kp["layers"]:
        x = decoder_layer(x, lp, num_heads=cfg["num_attention_heads"], eps=eps,
                          seq_tile=seq_tile, vmem_limit=vmem_limit)
    return post_ln_predictor(x, kp, eps=eps, seq_tile=seq_tile, vmem_limit=vmem_limit)


def prepare_kernel_params(p):
    """Kernel-facing params: fused (D,3D) QKV weight + bf16 matmul weights."""
    kp = dict(p)
    layers = []
    for lp in p["layers"]:
        lk = dict(lp)
        lk["wqkv"] = jnp.concatenate([lp["wq"], lp["wk"], lp["wv"]], axis=1).astype(BF16)
        lk["bqkv"] = jnp.concatenate([lp["bq"], lp["bk"], lp["bv"]], axis=1)
        for name in ("wo", "w1", "w2"):
            lk[name] = lp[name].astype(BF16)
        layers.append(lk)
    kp["layers"] = layers
    kp["pred_w"] = p["pred_w"].astype(BF16)
    return kp


# --------------------------------------------------------------------------------------
# pure-JAX f32 reference (mirrors the PyTorch Decoder.forward)
# --------------------------------------------------------------------------------------
def decoder_forward_ref(encoded, mask, ids_restore, p, *, cfg):
    del mask
    eps = cfg["layer_norm_eps"]
    H = cfg["num_attention_heads"]
    project = cfg["in_proj_dim"] != cfg["hidden_size"]
    x = reconstruct_sequence(encoded, ids_restore, p, eps=eps, project=project)
    B, S, D = x.shape
    hd = D // H
    scale = float(hd) ** -0.5
    for lp in p["layers"]:
        xn = _layer_norm(x, lp["ln1_g"], lp["ln1_b"], eps)
        q = xn @ lp["wq"] + lp["bq"]
        k = xn @ lp["wk"] + lp["bk"]
        v = xn @ lp["wv"] + lp["bv"]
        q = q.reshape(B, S, H, hd).transpose(0, 2, 1, 3)
        k = k.reshape(B, S, H, hd).transpose(0, 2, 1, 3)
        v = v.reshape(B, S, H, hd).transpose(0, 2, 1, 3)
        w = jax.nn.softmax(jnp.einsum("bhqd,bhkd->bhqk", q, k) * scale, axis=-1)
        a = jnp.einsum("bhqk,bhkd->bhqd", w, v).transpose(0, 2, 1, 3).reshape(B, S, D)
        a = a @ lp["wo"] + lp["bo"]
        h1 = x + a
        hn = _layer_norm(h1, lp["ln2_g"], lp["ln2_b"], eps)
        m = _gelu_tanh(hn @ lp["w1"] + lp["b1"])
        x = h1 + m @ lp["w2"] + lp["b2"]
    x = _layer_norm(x, p["post_ln_g"], p["post_ln_b"], eps)
    return x @ p["pred_w"] + p["pred_b"]


def init_params(key, cfg):
    D = cfg["hidden_size"]
    I = cfg["intermediate_size"]
    P = cfg["patch_size"] ** 2 * cfg["num_channels"]
    in_dim = cfg["in_proj_dim"]
    L = cfg["num_hidden_layers"]

    def rnd(k, shape, s=0.05):
        return jax.random.normal(k, shape, F32) * s

    keys = iter(jax.random.split(key, 16 * L + 16))
    layers = []
    for _ in range(L):
        layers.append({
            "ln1_g": jnp.ones((1, D), F32), "ln1_b": jnp.zeros((1, D), F32),
            "wq": rnd(next(keys), (D, D)), "bq": rnd(next(keys), (1, D)),
            "wk": rnd(next(keys), (D, D)), "bk": rnd(next(keys), (1, D)),
            "wv": rnd(next(keys), (D, D)), "bv": rnd(next(keys), (1, D)),
            "wo": rnd(next(keys), (D, D)), "bo": rnd(next(keys), (1, D)),
            "ln2_g": jnp.ones((1, D), F32), "ln2_b": jnp.zeros((1, D), F32),
            "w1": rnd(next(keys), (D, I)), "b1": rnd(next(keys), (1, I)),
            "w2": rnd(next(keys), (I, D)), "b2": rnd(next(keys), (1, D)),
        })
    return {
        "layers": layers,
        "proj_w": rnd(next(keys), (in_dim, D)), "proj_b": rnd(next(keys), (1, D)),
        "proj_ln_g": jnp.ones((1, D), F32), "proj_ln_b": jnp.zeros((1, D), F32),
        "mask_token": rnd(next(keys), (1, 1, D)),
        "post_ln_g": jnp.ones((1, D), F32), "post_ln_b": jnp.zeros((1, D), F32),
        "pred_w": rnd(next(keys), (D, P)), "pred_b": rnd(next(keys), (1, P)),
    }


if __name__ == "__main__":
    cfg = dict(
        image_size=16, patch_size=4, num_channels=3,
        in_proj_dim=48, hidden_size=64, intermediate_size=256,
        num_hidden_layers=2, num_attention_heads=4, layer_norm_eps=1e-6)
    B = 2
    num_positions = (cfg["image_size"] // cfg["patch_size"]) ** 2   # 16 tokens
    S_enc = 12                                                      # kept (unmasked) tokens

    key = jax.random.PRNGKey(0)
    k_par, k_enc, k_perm = jax.random.split(key, 3)
    params = init_params(k_par, cfg)          # f32 master params (reference path)
    kparams = prepare_kernel_params(params)   # fused-QKV / bf16 weights (kernel path)

    encoded = jax.random.normal(k_enc, (B, S_enc, cfg["in_proj_dim"]), F32)
    ids_restore = jnp.stack([
        jax.random.permutation(k, num_positions)
        for k in jax.random.split(k_perm, B)]).astype(jnp.int32)
    mask = jnp.zeros((B, num_positions), F32)  # part of the API, unused by forward

    # full-sequence tile (S=16); for real S use 64-128-row tiles (multiples of 16)
    seq_tile = 16

    ref = decoder_forward_ref(encoded, mask, ids_restore, params, cfg=cfg)

    fwd = functools.partial(decoder_forward, cfg=cfg, seq_tile=seq_tile)
    out = jax.block_until_ready(jax.jit(fwd)(encoded, mask, ids_restore, kparams))
    assert out.shape == ref.shape
    max_err = float(jnp.max(jnp.abs(out - ref)))
    assert jnp.allclose(out, ref, atol=3e-2, rtol=3e-2), f"mismatch vs ref: {max_err}"
    print("KERNEL_OK")
</pallas_src>

<mosaic_0001>
module attributes {stable_mosaic.version = 11 : i64} {
  func.func private @main(%arg0: i32) attributes {dimension_semantics = [#tpu.dimension_semantics<core_parallel>], iteration_bounds = array<i64: 2>, tpu.core_type = #tpu.core_type<sc_scalar_subcore>, window_params = []} {
    return
  }
}

module attributes {stable_mosaic.version = 11 : i64} {
  func.func private @main(%arg0: i32) attributes {dimension_semantics = [#tpu.dimension_semantics<core_parallel>], iteration_bounds = array<i64: 2>, tpu.core_type = #tpu.core_type<sc_scalar_subcore>, window_params = []} {
    return
  }
}

module attributes {stable_mosaic.version = 11 : i64} {
  func.func @_decoder_layer_kernel(%arg0: i32, %arg1: i32, %arg2: memref<1x16x64xf32, #tpu.memory_space<vmem>>, %arg3: memref<1x16x64xf32, #tpu.memory_space<vmem>>, %arg4: memref<1x64xf32, #tpu.memory_space<vmem>>, %arg5: memref<1x64xf32, #tpu.memory_space<vmem>>, %arg6: memref<64x192xbf16, #tpu.memory_space<vmem>>, %arg7: memref<1x192xf32, #tpu.memory_space<vmem>>, %arg8: memref<64x64xbf16, #tpu.memory_space<vmem>>, %arg9: memref<1x64xf32, #tpu.memory_space<vmem>>, %arg10: memref<1x64xf32, #tpu.memory_space<vmem>>, %arg11: memref<1x64xf32, #tpu.memory_space<vmem>>, %arg12: memref<64x256xbf16, #tpu.memory_space<vmem>>, %arg13: memref<1x256xf32, #tpu.memory_space<vmem>>, %arg14: memref<256x64xbf16, #tpu.memory_space<vmem>>, %arg15: memref<1x64xf32, #tpu.memory_space<vmem>>, %arg16: memref<1x16x64xf32, #tpu.memory_space<vmem>>, %arg17: memref<16x64xbf16, #tpu.memory_space<vmem>>, %arg18: memref<16x64xbf16, #tpu.memory_space<vmem>>, %arg19: memref<16x64xbf16, #tpu.memory_space<vmem>>) attributes {dimension_semantics = [#tpu.dimension_semantics<parallel>, #tpu.dimension_semantics<arbitrary>], iteration_bounds = array<i64: 2, 1>, scalar_prefetch = 0 : i64, scratch_operands = 3 : i64, tpu.core_type = #tpu.core_type<tc>, window_params = [{transform_indices = @transform_0, window_bounds = array<i64: 1, 16, 64>}, {transform_indices = @transform_1, window_bounds = array<i64: 1, 16, 64>}, {pipeline_mode = #tpu.pipeline_mode<synchronous>, transform_indices = @transform_2, window_bounds = array<i64: 1, 64>}, {pipeline_mode = #tpu.pipeline_mode<synchronous>, transform_indices = @transform_3, window_bounds = array<i64: 1, 64>}, {pipeline_mode = #tpu.pipeline_mode<synchronous>, transform_indices = @transform_4, window_bounds = array<i64: 64, 192>}, {pipeline_mode = #tpu.pipeline_mode<synchronous>, transform_indices = @transform_5, window_bounds = array<i64: 1, 192>}, {pipeline_mode = #tpu.pipeline_mode<synchronous>, transform_indices = @transform_6, window_bounds = array<i64: 64, 64>}, {pipeline_mode = #tpu.pipeline_mode<synchronous>, transform_indices = @transform_7, window_bounds = array<i64: 1, 64>}, {pipeline_mode = #tpu.pipeline_mode<synchronous>, transform_indices = @transform_8, window_bounds = array<i64: 1, 64>}, {pipeline_mode = #tpu.pipeline_mode<synchronous>, transform_indices = @transform_9, window_bounds = array<i64: 1, 64>}, {pipeline_mode = #tpu.pipeline_mode<synchronous>, transform_indices = @transform_10, window_bounds = array<i64: 64, 256>}, {pipeline_mode = #tpu.pipeline_mode<synchronous>, transform_indices = @transform_11, window_bounds = array<i64: 1, 256>}, {pipeline_mode = #tpu.pipeline_mode<synchronous>, transform_indices = @transform_12, window_bounds = array<i64: 256, 64>}, {pipeline_mode = #tpu.pipeline_mode<synchronous>, transform_indices = @transform_13, window_bounds = array<i64: 1, 64>}, {transform_indices = @transform_14, window_bounds = array<i64: 1, 16, 64>}]} {
    %c0_i32 = arith.constant 0 : i32
    %0 = arith.cmpi eq, %arg1, %c0_i32 : i32
    %1 = arith.extui %0 : i1 to i32
    %c0_i32_0 = arith.constant 0 : i32
    %2 = arith.cmpi ne, %1, %c0_i32_0 : i32
    scf.if %2 {
      %c0_63 = arith.constant 0 : index
      %c0_64 = arith.constant 0 : index
      %c0_65 = arith.constant 0 : index
      %144 = vector.load %arg2[%c0_63, %c0_64, %c0_65] : memref<1x16x64xf32, #tpu.memory_space<vmem>>, vector<1x16x64xf32>
      %145 = vector.shape_cast %144 : vector<1x16x64xf32> to vector<16x64xf32>
      %c0_66 = arith.constant 0 : index
      %c0_67 = arith.constant 0 : index
      %146 = vector.load %arg4[%c0_66, %c0_67] : memref<1x64xf32, #tpu.memory_space<vmem>>, vector<1x64xf32>
      %147 = vector.shape_cast %146 : vector<1x64xf32> to vector<64xf32>
      %c0_68 = arith.constant 0 : index
      %c0_69 = arith.constant 0 : index
      %148 = vector.load %arg5[%c0_68, %c0_69] : memref<1x64xf32, #tpu.memory_space<vmem>>, vector<1x64xf32>
      %149 = vector.shape_cast %148 : vector<1x64xf32> to vector<64xf32>
      %cst_70 = arith.constant dense<0.000000e+00> : vector<16xf32>
      %150 = vector.multi_reduction <add>, %145, %cst_70 [1] : vector<16x64xf32> to vector<16xf32>
      %151 = vector.shape_cast %150 : vector<16xf32> to vector<16x1xf32>
      %cst_71 = arith.constant 6.400000e+01 : f32
      %152 = vector.broadcast %cst_71 : f32 to vector<16x1xf32>
      %153 = arith.divf %151, %152 : vector<16x1xf32>
      %154 = vector.broadcast %153 : vector<16x1xf32> to vector<16x64xf32>
      %155 = arith.subf %145, %154 : vector<16x64xf32>
      %156 = arith.mulf %155, %155 : vector<16x64xf32>
      %cst_72 = arith.constant dense<0.000000e+00> : vector<16xf32>
      %157 = vector.multi_reduction <add>, %156, %cst_72 [1] : vector<16x64xf32> to vector<16xf32>
      %158 = vector.shape_cast %157 : vector<16xf32> to vector<16x1xf32>
      %cst_73 = arith.constant 6.400000e+01 : f32
      %159 = vector.broadcast %cst_73 : f32 to vector<16x1xf32>
      %160 = arith.divf %158, %159 : vector<16x1xf32>
      %161 = vector.broadcast %153 : vector<16x1xf32> to vector<16x64xf32>
      %162 = arith.subf %145, %161 : vector<16x64xf32>
      %cst_74 = arith.constant 9.99999997E-7 : f32
      %163 = vector.broadcast %cst_74 : f32 to vector<16x1xf32>
      %164 = arith.addf %160, %163 : vector<16x1xf32>
      %165 = math.rsqrt %164 : vector<16x1xf32>
      %166 = vector.broadcast %165 : vector<16x1xf32> to vector<16x64xf32>
      %167 = arith.mulf %162, %166 : vector<16x64xf32>
      %168 = vector.shape_cast %147 : vector<64xf32> to vector<1x64xf32>
      %169 = vector.broadcast %168 : vector<1x64xf32> to vector<16x64xf32>
      %170 = arith.mulf %167, %169 : vector<16x64xf32>
      %171 = vector.shape_cast %149 : vector<64xf32> to vector<1x64xf32>
      %172 = vector.broadcast %171 : vector<1x64xf32> to vector<16x64xf32>
      %173 = arith.addf %170, %172 : vector<16x64xf32>
      %174 = arith.truncf %173 : vector<16x64xf32> to vector<16x64xbf16>
      %c0_75 = arith.constant 0 : index
      %c0_76 = arith.constant 0 : index
      %175 = vector.load %arg6[%c0_75, %c0_76] : memref<64x192xbf16, #tpu.memory_space<vmem>>, vector<64x192xbf16>
      %cst_77 = arith.constant dense<0.000000e+00> : vector<16x192xf32>
      %176 = tpu.matmul %174, %175, %cst_77 {dimension_numbers = #tpu.dot_dimension_numbers<[1], [0], [0], [1], [0, 0, 1, 1], [], []>} : vector<16x64xbf16>, vector<64x192xbf16>, vector<16x192xf32> -> vector<16x192xf32>
      %c0_78 = arith.constant 0 : index
      %c0_79 = arith.constant 0 : index
      %177 = vector.load %arg7[%c0_78, %c0_79] : memref<1x192xf32, #tpu.memory_space<vmem>>, vector<1x192xf32>
      %178 = vector.shape_cast %177 : vector<1x192xf32> to vector<192xf32>
      %179 = vector.shape_cast %178 : vector<192xf32> to vector<1x192xf32>
      %180 = vector.broadcast %179 : vector<1x192xf32> to vector<16x192xf32>
      %181 = arith.addf %176, %180 : vector<16x192xf32>
      %182 = vector.extract_strided_slice %181 {offsets = [0, 0], sizes = [16, 64], strides = [1, 1]} : vector<16x192xf32> to vector<16x64xf32>
      %cst_80 = arith.constant 2.500000e-01 : f32
      %183 = vector.broadcast %cst_80 : f32 to vector<16x64xf32>
      %184 = arith.mulf %182, %183 : vector<16x64xf32>
      %185 = arith.truncf %184 : vector<16x64xf32> to vector<16x64xbf16>
      %c0_81 = arith.constant 0 : index
      %c0_82 = arith.constant 0 : index
      %186 = vector.load %arg17[%c0_81, %c0_82] : memref<16x64xbf16, #tpu.memory_space<vmem>>, vector<16x64xbf16>
      tpu.vector_store %arg17[%c0_81, %c0_82], %185 {strides = array<i32>} : memref<16x64xbf16, #tpu.memory_space<vmem>>, vector<16x64xbf16>,
      %187 = vector.extract_strided_slice %181 {offsets = [0, 64], sizes = [16, 64], strides = [1, 1]} : vector<16x192xf32> to vector<16x64xf32>
      %188 = arith.truncf %187 : vector<16x64xf32> to vector<16x64xbf16>
      %c0_83 = arith.constant 0 : index
      %c0_84 = arith.constant 0 : index
      %189 = vector.load %arg18[%c0_83, %c0_84] : memref<16x64xbf16, #tpu.memory_space<vmem>>, vector<16x64xbf16>
      tpu.vector_store %arg18[%c0_83, %c0_84], %188 {strides = array<i32>} : memref<16x64xbf16, #tpu.memory_space<vmem>>, vector<16x64xbf16>,
      %190 = vector.extract_strided_slice %181 {offsets = [0, 128], sizes = [16, 64], strides = [1, 1]} : vector<16x192xf32> to vector<16x64xf32>
      %191 = arith.truncf %190 : vector<16x64xf32> to vector<16x64xbf16>
      %c0_85 = arith.constant 0 : index
      %c0_86 = arith.constant 0 : index
      %192 = vector.load %arg19[%c0_85, %c0_86] : memref<16x64xbf16, #tpu.memory_space<vmem>>, vector<16x64xbf16>
      tpu.vector_store %arg19[%c0_85, %c0_86], %191 {strides = array<i32>} : memref<16x64xbf16, #tpu.memory_space<vmem>>, vector<16x64xbf16>,
    } else {
    }
    %c16_i32 = arith.constant 16 : i32
    %3 = arith.muli %arg1, %c16_i32 : i32
    %4 = tpu.assume_multiple %3, 16 : i32
    %5 = arith.index_cast %4 : i32 to index
    %c0 = arith.constant 0 : index
    %6 = vector.load %arg17[%5, %c0] : memref<16x64xbf16, #tpu.memory_space<vmem>>, vector<16x64xbf16>
    %7 = vector.extract_strided_slice %6 {offsets = [0, 0], sizes = [16, 16], strides = [1, 1]} : vector<16x64xbf16> to vector<16x16xbf16>
    %c0_1 = arith.constant 0 : index
    %c0_2 = arith.constant 0 : index
    %8 = vector.load %arg18[%c0_1, %c0_2] : memref<16x64xbf16, #tpu.memory_space<vmem>>, vector<16x16xbf16>
    %c0_3 = arith.constant 0 : index
    %c0_4 = arith.constant 0 : index
    %9 = vector.load %arg19[%c0_3, %c0_4] : memref<16x64xbf16, #tpu.memory_space<vmem>>, vector<16x16xbf16>
    %cst = arith.constant dense<0.000000e+00> : vector<16x16xf32>
    %10 = tpu.matmul %7, %8, %cst {dimension_numbers = #tpu.dot_dimension_numbers<[1], [1], [0], [0], [0, 0, 1, 0], [], []>} : vector<16x16xbf16>, vector<16x16xbf16>, vector<16x16xf32> -> vector<16x16xf32>
    %cst_5 = arith.constant dense<0xFF800000> : vector<16xf32>
    %11 = vector.multi_reduction <maximumf>, %10, %cst_5 [1] : vector<16x16xf32> to vector<16xf32>
    %12 = vector.shape_cast %11 : vector<16xf32> to vector<16x1xf32>
    %13 = vector.broadcast %12 : vector<16x1xf32> to vector<16x16xf32>
    %14 = arith.subf %10, %13 : vector<16x16xf32>
    %15 = math.exp %14 : vector<16x16xf32>
    %cst_6 = arith.constant dense<0.000000e+00> : vector<16xf32>
    %16 = vector.multi_reduction <add>, %15, %cst_6 [1] : vector<16x16xf32> to vector<16xf32>
    %17 = vector.shape_cast %16 : vector<16xf32> to vector<16x1xf32>
    %18 = tpu.reciprocal %17 {approx = true} : vector<16x1xf32> -> vector<16x1xf32>
    %19 = vector.broadcast %18 : vector<16x1xf32> to vector<16x16xf32>
    %20 = arith.mulf %15, %19 : vector<16x16xf32>
    %21 = arith.truncf %20 : vector<16x16xf32> to vector<16x16xbf16>
    %cst_7 = arith.constant dense<0.000000e+00> : vector<16x16xf32>
    %22 = tpu.matmul %21, %9, %cst_7 {dimension_numbers = #tpu.dot_dimension_numbers<[1], [0], [0], [1], [0, 0, 1, 1], [], []>} : vector<16x16xbf16>, vector<16x16xbf16>, vector<16x16xf32> -> vector<16x16xf32>
    %23 = vector.extract_strided_slice %6 {offsets = [0, 16], sizes = [16, 16], strides = [1, 1]} : vector<16x64xbf16> to vector<16x16xbf16>
    %c0_8 = arith.constant 0 : index
    %c16 = arith.constant 16 : index
    %24 = vector.load %arg18[%c0_8, %c16] : memref<16x64xbf16, #tpu.memory_space<vmem>>, vector<16x16xbf16>
    %c0_9 = arith.constant 0 : index
    %c16_10 = arith.constant 16 : index
    %25 = vector.load %arg19[%c0_9, %c16_10] : memref<16x64xbf16, #tpu.memory_space<vmem>>, vector<16x16xbf16>
    %cst_11 = arith.constant dense<0.000000e+00> : vector<16x16xf32>
    %26 = tpu.matmul %23, %24, %cst_11 {dimension_numbers = #tpu.dot_dimension_numbers<[1], [1], [0], [0], [0, 0, 1, 0], [], []>} : vector<16x16xbf16>, vector<16x16xbf16>, vector<16x16xf32> -> vector<16x16xf32>
    %cst_12 = arith.constant dense<0xFF800000> : vector<16xf32>
    %27 = vector.multi_reduction <maximumf>, %26, %cst_12 [1] : vector<16x16xf32> to vector<16xf32>
    %28 = vector.shape_cast %27 : vector<16xf32> to vector<16x1xf32>
    %29 = vector.broadcast %28 : vector<16x1xf32> to vector<16x16xf32>
    %30 = arith.subf %26, %29 : vector<16x16xf32>
    %31 = math.exp %30 : vector<16x16xf32>
    %cst_13 = arith.constant dense<0.000000e+00> : vector<16xf32>
    %32 = vector.multi_reduction <add>, %31, %cst_13 [1] : vector<16x16xf32> to vector<16xf32>
    %33 = vector.shape_cast %32 : vector<16xf32> to vector<16x1xf32>
    %34 = tpu.reciprocal %33 {approx = true} : vector<16x1xf32> -> vector<16x1xf32>
    %35 = vector.broadcast %34 : vector<16x1xf32> to vector<16x16xf32>
    %36 = arith.mulf %31, %35 : vector<16x16xf32>
    %37 = arith.truncf %36 : vector<16x16xf32> to vector<16x16xbf16>
    %cst_14 = arith.constant dense<0.000000e+00> : vector<16x16xf32>
    %38 = tpu.matmul %37, %25, %cst_14 {dimension_numbers = #tpu.dot_dimension_numbers<[1], [0], [0], [1], [0, 0, 1, 1], [], []>} : vector<16x16xbf16>, vector<16x16xbf16>, vector<16x16xf32> -> vector<16x16xf32>
    %39 = vector.extract_strided_slice %6 {offsets = [0, 32], sizes = [16, 16], strides = [1, 1]} : vector<16x64xbf16> to vector<16x16xbf16>
    %c0_15 = arith.constant 0 : index
    %c32 = arith.constant 32 : index
    %40 = vector.load %arg18[%c0_15, %c32] : memref<16x64xbf16, #tpu.memory_space<vmem>>, vector<16x16xbf16>
    %c0_16 = arith.constant 0 : index
    %c32_17 = arith.constant 32 : index
    %41 = vector.load %arg19[%c0_16, %c32_17] : memref<16x64xbf16, #tpu.memory_space<vmem>>, vector<16x16xbf16>
    %cst_18 = arith.constant dense<0.000000e+00> : vector<16x16xf32>
    %42 = tpu.matmul %39, %40, %cst_18 {dimension_numbers = #tpu.dot_dimension_numbers<[1], [1], [0], [0], [0, 0, 1, 0], [], []>} : vector<16x16xbf16>, vector<16x16xbf16>, vector<16x16xf32> -> vector<16x16xf32>
    %cst_19 = arith.constant dense<0xFF800000> : vector<16xf32>
    %43 = vector.multi_reduction <maximumf>, %42, %cst_19 [1] : vector<16x16xf32> to vector<16xf32>
    %44 = vector.shape_cast %43 : vector<16xf32> to vector<16x1xf32>
    %45 = vector.broadcast %44 : vector<16x1xf32> to vector<16x16xf32>
    %46 = arith.subf %42, %45 : vector<16x16xf32>
    %47 = math.exp %46 : vector<16x16xf32>
    %cst_20 = arith.constant dense<0.000000e+00> : vector<16xf32>
    %48 = vector.multi_reduction <add>, %47, %cst_20 [1] : vector<16x16xf32> to vector<16xf32>
    %49 = vector.shape_cast %48 : vector<16xf32> to vector<16x1xf32>
    %50 = tpu.reciprocal %49 {approx = true} : vector<16x1xf32> -> vector<16x1xf32>
    %51 = vector.broadcast %50 : vector<16x1xf32> to vector<16x16xf32>
    %52 = arith.mulf %47, %51 : vector<16x16xf32>
    %53 = arith.truncf %52 : vector<16x16xf32> to vector<16x16xbf16>
    %cst_21 = arith.constant dense<0.000000e+00> : vector<16x16xf32>
    %54 = tpu.matmul %53, %41, %cst_21 {dimension_numbers = #tpu.dot_dimension_numbers<[1], [0], [0], [1], [0, 0, 1, 1], [], []>} : vector<16x16xbf16>, vector<16x16xbf16>, vector<16x16xf32> -> vector<16x16xf32>
    %55 = vector.extract_strided_slice %6 {offsets = [0, 48], sizes = [16, 16], strides = [1, 1]} : vector<16x64xbf16> to vector<16x16xbf16>
    %c0_22 = arith.constant 0 : index
    %c48 = arith.constant 48 : index
    %56 = vector.load %arg18[%c0_22, %c48] : memref<16x64xbf16, #tpu.memory_space<vmem>>, vector<16x16xbf16>
    %c0_23 = arith.constant 0 : index
    %c48_24 = arith.constant 48 : index
    %57 = vector.load %arg19[%c0_23, %c48_24] : memref<16x64xbf16, #tpu.memory_space<vmem>>, vector<16x16xbf16>
    %cst_25 = arith.constant dense<0.000000e+00> : vector<16x16xf32>
    %58 = tpu.matmul %55, %56, %cst_25 {dimension_numbers = #tpu.dot_dimension_numbers<[1], [1], [0], [0], [0, 0, 1, 0], [], []>} : vector<16x16xbf16>, vector<16x16xbf16>, vector<16x16xf32> -> vector<16x16xf32>
    %cst_26 = arith.constant dense<0xFF800000> : vector<16xf32>
    %59 = vector.multi_reduction <maximumf>, %58, %cst_26 [1] : vector<16x16xf32> to vector<16xf32>
    %60 = vector.shape_cast %59 : vector<16xf32> to vector<16x1xf32>
    %61 = vector.broadcast %60 : vector<16x1xf32> to vector<16x16xf32>
    %62 = arith.subf %58, %61 : vector<16x16xf32>
    %63 = math.exp %62 : vector<16x16xf32>
    %cst_27 = arith.constant dense<0.000000e+00> : vector<16xf32>
    %64 = vector.multi_reduction <add>, %63, %cst_27 [1] : vector<16x16xf32> to vector<16xf32>
    %65 = vector.shape_cast %64 : vector<16xf32> to vector<16x1xf32>
    %66 = tpu.reciprocal %65 {approx = true} : vector<16x1xf32> -> vector<16x1xf32>
    %67 = vector.broadcast %66 : vector<16x1xf32> to vector<16x16xf32>
    %68 = arith.mulf %63, %67 : vector<16x16xf32>
    %69 = arith.truncf %68 : vector<16x16xf32> to vector<16x16xbf16>
    %cst_28 = arith.constant dense<0.000000e+00> : vector<16x16xf32>
    %70 = tpu.matmul %69, %57, %cst_28 {dimension_numbers = #tpu.dot_dimension_numbers<[1], [0], [0], [1], [0, 0, 1, 1], [], []>} : vector<16x16xbf16>, vector<16x16xbf16>, vector<16x16xf32> -> vector<16x16xf32>
    %71 = tpu.concatenate %22, %38, %54, %70 in 1 : vector<16x16xf32>, vector<16x16xf32>, vector<16x16xf32>, vector<16x16xf32> -> vector<16x64xf32>
    %72 = arith.truncf %71 : vector<16x64xf32> to vector<16x64xbf16>
    %c0_29 = arith.constant 0 : index
    %c0_30 = arith.constant 0 : index
    %73 = vector.load %arg8[%c0_29, %c0_30] : memref<64x64xbf16, #tpu.memory_space<vmem>>, vector<64x64xbf16>
    %cst_31 = arith.constant dense<0.000000e+00> : vector<16x64xf32>
    %74 = tpu.matmul %72, %73, %cst_31 {dimension_numbers = #tpu.dot_dimension_numbers<[1], [0], [0], [1], [0, 0, 1, 1], [], []>} : vector<16x64xbf16>, vector<64x64xbf16>, vector<16x64xf32> -> vector<16x64xf32>
    %c0_32 = arith.constant 0 : index
    %c0_33 = arith.constant 0 : index
    %75 = vector.load %arg9[%c0_32, %c0_33] : memref<1x64xf32, #tpu.memory_space<vmem>>, vector<1x64xf32>
    %76 = vector.shape_cast %75 : vector<1x64xf32> to vector<64xf32>
    %77 = vector.shape_cast %76 : vector<64xf32> to vector<1x64xf32>
    %78 = vector.broadcast %77 : vector<1x64xf32> to vector<16x64xf32>
    %79 = arith.addf %74, %78 : vector<16x64xf32>
    %c0_34 = arith.constant 0 : index
    %c0_35 = arith.constant 0 : index
    %c0_36 = arith.constant 0 : index
    %80 = vector.load %arg3[%c0_34, %c0_35, %c0_36] : memref<1x16x64xf32, #tpu.memory_space<vmem>>, vector<1x16x64xf32>
    %81 = vector.shape_cast %80 : vector<1x16x64xf32> to vector<16x64xf32>
    %82 = arith.addf %81, %79 : vector<16x64xf32>
    %c0_37 = arith.constant 0 : index
    %c0_38 = arith.constant 0 : index
    %83 = vector.load %arg10[%c0_37, %c0_38] : memref<1x64xf32, #tpu.memory_space<vmem>>, vector<1x64xf32>
    %84 = vector.shape_cast %83 : vector<1x64xf32> to vector<64xf32>
    %c0_39 = arith.constant 0 : index
    %c0_40 = arith.constant 0 : index
    %85 = vector.load %arg11[%c0_39, %c0_40] : memref<1x64xf32, #tpu.memory_space<vmem>>, vector<1x64xf32>
    %86 = vector.shape_cast %85 : vector<1x64xf32> to vector<64xf32>
    %cst_41 = arith.constant dense<0.000000e+00> : vector<16xf32>
    %87 = vector.multi_reduction <add>, %82, %cst_41 [1] : vector<16x64xf32> to vector<16xf32>
    %88 = vector.shape_cast %87 : vector<16xf32> to vector<16x1xf32>
    %cst_42 = arith.constant 6.400000e+01 : f32
    %89 = vector.broadcast %cst_42 : f32 to vector<16x1xf32>
    %90 = arith.divf %88, %89 : vector<16x1xf32>
    %91 = vector.broadcast %90 : vector<16x1xf32> to vector<16x64xf32>
    %92 = arith.subf %82, %91 : vector<16x64xf32>
    %93 = arith.mulf %92, %92 : vector<16x64xf32>
    %cst_43 = arith.constant dense<0.000000e+00> : vector<16xf32>
    %94 = vector.multi_reduction <add>, %93, %cst_43 [1] : vector<16x64xf32> to vector<16xf32>
    %95 = vector.shape_cast %94 : vector<16xf32> to vector<16x1xf32>
    %cst_44 = arith.constant 6.400000e+01 : f32
    %96 = vector.broadcast %cst_44 : f32 to vector<16x1xf32>
    %97 = arith.divf %95, %96 : vector<16x1xf32>
    %98 = vector.broadcast %90 : vector<16x1xf32> to vector<16x64xf32>
    %99 = arith.subf %82, %98 : vector<16x64xf32>
    %cst_45 = arith.constant 9.99999997E-7 : f32
    %100 = vector.broadcast %cst_45 : f32 to vector<16x1xf32>
    %101 = arith.addf %97, %100 : vector<16x1xf32>
    %102 = math.rsqrt %101 : vector<16x1xf32>
    %103 = vector.broadcast %102 : vector<16x1xf32> to vector<16x64xf32>
    %104 = arith.mulf %99, %103 : vector<16x64xf32>
    %105 = vector.shape_cast %84 : vector<64xf32> to vector<1x64xf32>
    %106 = vector.broadcast %105 : vector<1x64xf32> to vector<16x64xf32>
    %107 = arith.mulf %104, %106 : vector<16x64xf32>
    %108 = vector.shape_cast %86 : vector<64xf32> to vector<1x64xf32>
    %109 = vector.broadcast %108 : vector<1x64xf32> to vector<16x64xf32>
    %110 = arith.addf %107, %109 : vector<16x64xf32>
    %111 = arith.truncf %110 : vector<16x64xf32> to vector<16x64xbf16>
    %c0_46 = arith.constant 0 : index
    %c0_47 = arith.constant 0 : index
    %112 = vector.load %arg12[%c0_46, %c0_47] : memref<64x256xbf16, #tpu.memory_space<vmem>>, vector<64x256xbf16>
    %cst_48 = arith.constant dense<0.000000e+00> : vector<16x256xf32>
    %113 = tpu.matmul %111, %112, %cst_48 {dimension_numbers = #tpu.dot_dimension_numbers<[1], [0], [0], [1], [0, 0, 1, 1], [], []>} : vector<16x64xbf16>, vector<64x256xbf16>, vector<16x256xf32> -> vector<16x256xf32>
    %c0_49 = arith.constant 0 : index
    %c0_50 = arith.constant 0 : index
    %114 = vector.load %arg13[%c0_49, %c0_50] : memref<1x256xf32, #tpu.memory_space<vmem>>, vector<1x256xf32>
    %115 = vector.shape_cast %114 : vector<1x256xf32> to vector<256xf32>
    %116 = vector.shape_cast %115 : vector<256xf32> to vector<1x256xf32>
    %117 = vector.broadcast %116 : vector<1x256xf32> to vector<16x256xf32>
    %118 = arith.addf %113, %117 : vector<16x256xf32>
    %cst_51 = arith.constant 5.000000e-01 : f32
    %119 = vector.broadcast %cst_51 : f32 to vector<16x256xf32>
    %120 = arith.mulf %119, %118 : vector<16x256xf32>
    %cst_52 = arith.constant 4.471500e-02 : f32
    %121 = vector.broadcast %cst_52 : f32 to vector<16x256xf32>
    %122 = arith.mulf %121, %118 : vector<16x256xf32>
    %123 = arith.mulf %122, %118 : vector<16x256xf32>
    %124 = arith.mulf %123, %118 : vector<16x256xf32>
    %125 = arith.addf %118, %124 : vector<16x256xf32>
    %cst_53 = arith.constant 0.797884583 : f32
    %126 = vector.broadcast %cst_53 : f32 to vector<16x256xf32>
    %127 = arith.mulf %126, %125 : vector<16x256xf32>
    %128 = math.tanh %127 : vector<16x256xf32>
    %cst_54 = arith.constant 1.000000e+00 : f32
    %129 = vector.broadcast %cst_54 : f32 to vector<16x256xf32>
    %130 = arith.addf %129, %128 : vector<16x256xf32>
    %131 = arith.mulf %120, %130 : vector<16x256xf32>
    %132 = arith.truncf %131 : vector<16x256xf32> to vector<16x256xbf16>
    %c0_55 = arith.constant 0 : index
    %c0_56 = arith.constant 0 : index
    %133 = vector.load %arg14[%c0_55, %c0_56] : memref<256x64xbf16, #tpu.memory_space<vmem>>, vector<256x64xbf16>
    %cst_57 = arith.constant dense<0.000000e+00> : vector<16x64xf32>
    %134 = tpu.matmul %132, %133, %cst_57 {dimension_numbers = #tpu.dot_dimension_numbers<[1], [0], [0], [1], [0, 0, 1, 1], [], []>} : vector<16x256xbf16>, vector<256x64xbf16>, vector<16x64xf32> -> vector<16x64xf32>
    %135 = arith.addf %82, %134 : vector<16x64xf32>
    %c0_58 = arith.constant 0 : index
    %c0_59 = arith.constant 0 : index
    %136 = vector.load %arg15[%c0_58, %c0_59] : memref<1x64xf32, #tpu.memory_space<vmem>>, vector<1x64xf32>
    %137 = vector.shape_cast %136 : vector<1x64xf32> to vector<64xf32>
    %138 = vector.shape_cast %137 : vector<64xf32> to vector<1x64xf32>
    %139 = vector.broadcast %138 : vector<1x64xf32> to vector<16x64xf32>
    %140 = arith.addf %135, %139 : vector<16x64xf32>
    %c0_60 = arith.constant 0 : index
    %c0_61 = arith.constant 0 : index
    %c0_62 = arith.constant 0 : index
    %141 = vector.load %arg16[%c0_60, %c0_61, %c0_62] : memref<1x16x64xf32, #tpu.memory_space<vmem>>, vector<1x16x64xf32>
    %142 = vector.shape_cast %141 : vector<1x16x64xf32> to vector<16x64xf32>
    %143 = vector.shape_cast %140 : vector<16x64xf32> to vector<1x16x64xf32>
    tpu.vector_store %arg16[%c0_60, %c0_61, %c0_62], %143 {strides = array<i32>} : memref<1x16x64xf32, #tpu.memory_space<vmem>>, vector<1x16x64xf32>,
    return
  }
  func.func @transform_0(%arg0: i32, %arg1: i32) -> (i32, i32, i32) {
    %c0_i32 = arith.constant 0 : i32
    %c0_i32_0 = arith.constant 0 : i32
    %c0_i32_1 = arith.constant 0 : i32
    return %arg0, %c0_i32, %c0_i32_0 : i32, i32, i32
  }
  func.func @transform_1(%arg0: i32, %arg1: i32) -> (i32, i32, i32) {
    %c0_i32 = arith.constant 0 : i32
    %c0_i32_0 = arith.constant 0 : i32
    return %arg0, %arg1, %c0_i32 : i32, i32, i32
  }
  func.func @transform_2(%arg0: i32, %arg1: i32) -> (i32, i32) {
    %c0_i32 = arith.constant 0 : i32
    %c0_i32_0 = arith.constant 0 : i32
    %c0_i32_1 = arith.constant 0 : i32
    return %c0_i32, %c0_i32_0 : i32, i32
  }
  func.func @transform_3(%arg0: i32, %arg1: i32) -> (i32, i32) {
    %c0_i32 = arith.constant 0 : i32
    %c0_i32_0 = arith.constant 0 : i32
    %c0_i32_1 = arith.constant 0 : i32
    return %c0_i32, %c0_i32_0 : i32, i32
  }
  func.func @transform_4(%arg0: i32, %arg1: i32) -> (i32, i32) {
    %c0_i32 = arith.constant 0 : i32
    %c0_i32_0 = arith.constant 0 : i32
    %c0_i32_1 = arith.constant 0 : i32
    return %c0_i32, %c0_i32_0 : i32, i32
  }
  func.func @transform_5(%arg0: i32, %arg1: i32) -> (i32, i32) {
    %c0_i32 = arith.constant 0 : i32
    %c0_i32_0 = arith.constant 0 : i32
    %c0_i32_1 = arith.constant 0 : i32
    return %c0_i32, %c0_i32_0 : i32, i32
  }
  func.func @transform_6(%arg0: i32, %arg1: i32) -> (i32, i32) {
    %c0_i32 = arith.constant 0 : i32
    %c0_i32_0 = arith.constant 0 : i32
    %c0_i32_1 = arith.constant 0 : i32
    return %c0_i32, %c0_i32_0 : i32, i32
  }
  func.func @transform_7(%arg0: i32, %arg1: i32) -> (i32, i32) {
    %c0_i32 = arith.constant 0 : i32
    %c0_i32_0 = arith.constant 0 : i32
    %c0_i32_1 = arith.constant 0 : i32
    return %c0_i32, %c0_i32_0 : i32, i32
  }
  func.func @transform_8(%arg0: i32, %arg1: i32) -> (i32, i32) {
    %c0_i32 = arith.constant 0 : i32
    %c0_i32_0 = arith.constant 0 : i32
    %c0_i32_1 = arith.constant 0 : i32
    return %c0_i32, %c0_i32_0 : i32, i32
  }
  func.func @transform_9(%arg0: i32, %arg1: i32) -> (i32, i32) {
    %c0_i32 = arith.constant 0 : i32
    %c0_i32_0 = arith.constant 0 : i32
    %c0_i32_1 = arith.constant 0 : i32
    return %c0_i32, %c0_i32_0 : i32, i32
  }
  func.func @transform_10(%arg0: i32, %arg1: i32) -> (i32, i32) {
    %c0_i32 = arith.constant 0 : i32
    %c0_i32_0 = arith.constant 0 : i32
    %c0_i32_1 = arith.constant 0 : i32
    return %c0_i32, %c0_i32_0 : i32, i32
  }
  func.func @transform_11(%arg0: i32, %arg1: i32) -> (i32, i32) {
    %c0_i32 = arith.constant 0 : i32
    %c0_i32_0 = arith.constant 0 : i32
    %c0_i32_1 = arith.constant 0 : i32
    return %c0_i32, %c0_i32_0 : i32, i32
  }
  func.func @transform_12(%arg0: i32, %arg1: i32) -> (i32, i32) {
    %c0_i32 = arith.constant 0 : i32
    %c0_i32_0 = arith.constant 0 : i32
    %c0_i32_1 = arith.constant 0 : i32
    return %c0_i32, %c0_i32_0 : i32, i32
  }
  func.func @transform_13(%arg0: i32, %arg1: i32) -> (i32, i32) {
    %c0_i32 = arith.constant 0 : i32
    %c0_i32_0 = arith.constant 0 : i32
    %c0_i32_1 = arith.constant 0 : i32
    return %c0_i32, %c0_i32_0 : i32, i32
  }
  func.func @transform_14(%arg0: i32, %arg1: i32) -> (i32, i32, i32) {
    %c0_i32 = arith.constant 0 : i32
    %c0_i32_0 = arith.constant 0 : i32
    return %arg0, %arg1, %c0_i32 : i32, i32, i32
  }
}

module attributes {stable_mosaic.version = 11 : i64} {
  func.func @_ln_linear_kernel(%arg0: i32, %arg1: i32, %arg2: memref<1x16x64xf32, #tpu.memory_space<vmem>>, %arg3: memref<1x64xf32, #tpu.memory_space<vmem>>, %arg4: memref<1x64xf32, #tpu.memory_space<vmem>>, %arg5: memref<64x48xbf16, #tpu.memory_space<vmem>>, %arg6: memref<1x48xf32, #tpu.memory_space<vmem>>, %arg7: memref<1x16x48xf32, #tpu.memory_space<vmem>>) attributes {dimension_semantics = [#tpu.dimension_semantics<parallel>, #tpu.dimension_semantics<parallel>], iteration_bounds = array<i64: 2, 1>, scalar_prefetch = 0 : i64, scratch_operands = 0 : i64, tpu.core_type = #tpu.core_type<tc>, window_params = [{transform_indices = @transform_0, window_bounds = array<i64: 1, 16, 64>}, {pipeline_mode = #tpu.pipeline_mode<synchronous>, transform_indices = @transform_1, window_bounds = array<i64: 1, 64>}, {pipeline_mode = #tpu.pipeline_mode<synchronous>, transform_indices = @transform_2, window_bounds = array<i64: 1, 64>}, {pipeline_mode = #tpu.pipeline_mode<synchronous>, transform_indices = @transform_3, window_bounds = array<i64: 64, 48>}, {pipeline_mode = #tpu.pipeline_mode<synchronous>, transform_indices = @transform_4, window_bounds = array<i64: 1, 48>}, {transform_indices = @transform_5, window_bounds = array<i64: 1, 16, 48>}]} {
    %c0 = arith.constant 0 : index
    %c0_0 = arith.constant 0 : index
    %c0_1 = arith.constant 0 : index
    %0 = vector.load %arg2[%c0, %c0_0, %c0_1] : memref<1x16x64xf32, #tpu.memory_space<vmem>>, vector<1x16x64xf32>
    %1 = vector.shape_cast %0 : vector<1x16x64xf32> to vector<16x64xf32>
    %c0_2 = arith.constant 0 : index
    %c0_3 = arith.constant 0 : index
    %2 = vector.load %arg3[%c0_2, %c0_3] : memref<1x64xf32, #tpu.memory_space<vmem>>, vector<1x64xf32>
    %3 = vector.shape_cast %2 : vector<1x64xf32> to vector<64xf32>
    %c0_4 = arith.constant 0 : index
    %c0_5 = arith.constant 0 : index
    %4 = vector.load %arg4[%c0_4, %c0_5] : memref<1x64xf32, #tpu.memory_space<vmem>>, vector<1x64xf32>
    %5 = vector.shape_cast %4 : vector<1x64xf32> to vector<64xf32>
    %cst = arith.constant dense<0.000000e+00> : vector<16xf32>
    %6 = vector.multi_reduction <add>, %1, %cst [1] : vector<16x64xf32> to vector<16xf32>
    %7 = vector.shape_cast %6 : vector<16xf32> to vector<16x1xf32>
    %cst_6 = arith.constant 6.400000e+01 : f32
    %8 = vector.broadcast %cst_6 : f32 to vector<16x1xf32>
    %9 = arith.divf %7, %8 : vector<16x1xf32>
    %10 = vector.broadcast %9 : vector<16x1xf32> to vector<16x64xf32>
    %11 = arith.subf %1, %10 : vector<16x64xf32>
    %12 = arith.mulf %11, %11 : vector<16x64xf32>
    %cst_7 = arith.constant dense<0.000000e+00> : vector<16xf32>
    %13 = vector.multi_reduction <add>, %12, %cst_7 [1] : vector<16x64xf32> to vector<16xf32>
    %14 = vector.shape_cast %13 : vector<16xf32> to vector<16x1xf32>
    %cst_8 = arith.constant 6.400000e+01 : f32
    %15 = vector.broadcast %cst_8 : f32 to vector<16x1xf32>
    %16 = arith.divf %14, %15 : vector<16x1xf32>
    %17 = vector.broadcast %9 : vector<16x1xf32> to vector<16x64xf32>
    %18 = arith.subf %1, %17 : vector<16x64xf32>
    %cst_9 = arith.constant 9.99999997E-7 : f32
    %19 = vector.broadcast %cst_9 : f32 to vector<16x1xf32>
    %20 = arith.addf %16, %19 : vector<16x1xf32>
    %21 = math.rsqrt %20 : vector<16x1xf32>
    %22 = vector.broadcast %21 : vector<16x1xf32> to vector<16x64xf32>
    %23 = arith.mulf %18, %22 : vector<16x64xf32>
    %24 = vector.shape_cast %3 : vector<64xf32> to vector<1x64xf32>
    %25 = vector.broadcast %24 : vector<1x64xf32> to vector<16x64xf32>
    %26 = arith.mulf %23, %25 : vector<16x64xf32>
    %27 = vector.shape_cast %5 : vector<64xf32> to vector<1x64xf32>
    %28 = vector.broadcast %27 : vector<1x64xf32> to vector<16x64xf32>
    %29 = arith.addf %26, %28 : vector<16x64xf32>
    %30 = arith.truncf %29 : vector<16x64xf32> to vector<16x64xbf16>
    %c0_10 = arith.constant 0 : index
    %c0_11 = arith.constant 0 : index
    %31 = vector.load %arg5[%c0_10, %c0_11] : memref<64x48xbf16, #tpu.memory_space<vmem>>, vector<64x48xbf16>
    %cst_12 = arith.constant dense<0.000000e+00> : vector<16x48xf32>
    %32 = tpu.matmul %30, %31, %cst_12 {dimension_numbers = #tpu.dot_dimension_numbers<[1], [0], [0], [1], [0, 0, 1, 1], [], []>} : vector<16x64xbf16>, vector<64x48xbf16>, vector<16x48xf32> -> vector<16x48xf32>
    %c0_13 = arith.constant 0 : index
    %c0_14 = arith.constant 0 : index
    %33 = vector.load %arg6[%c0_13, %c0_14] : memref<1x48xf32, #tpu.memory_space<vmem>>, vector<1x48xf32>
    %34 = vector.shape_cast %33 : vector<1x48xf32> to vector<48xf32>
    %35 = vector.shape_cast %34 : vector<48xf32> to vector<1x48xf32>
    %36 = vector.broadcast %35 : vector<1x48xf32> to vector<16x48xf32>
    %37 = arith.addf %32, %36 : vector<16x48xf32>
    %c0_15 = arith.constant 0 : index
    %c0_16 = arith.constant 0 : index
    %c0_17 = arith.constant 0 : index
    %38 = vector.load %arg7[%c0_15, %c0_16, %c0_17] : memref<1x16x48xf32, #tpu.memory_space<vmem>>, vector<1x16x48xf32>
    %39 = vector.shape_cast %38 : vector<1x16x48xf32> to vector<16x48xf32>
    %40 = vector.shape_cast %37 : vector<16x48xf32> to vector<1x16x48xf32>
    tpu.vector_store %arg7[%c0_15, %c0_16, %c0_17], %40 {strides = array<i32>} : memref<1x16x48xf32, #tpu.memory_space<vmem>>, vector<1x16x48xf32>,
    return
  }
  func.func @transform_0(%arg0: i32, %arg1: i32) -> (i32, i32, i32) {
    %c0_i32 = arith.constant 0 : i32
    %c0_i32_0 = arith.constant 0 : i32
    return %arg0, %arg1, %c0_i32 : i32, i32, i32
  }
  func.func @transform_1(%arg0: i32, %arg1: i32) -> (i32, i32) {
    %c0_i32 = arith.constant 0 : i32
    %c0_i32_0 = arith.constant 0 : i32
    %c0_i32_1 = arith.constant 0 : i32
    return %c0_i32, %c0_i32_0 : i32, i32
  }
  func.func @transform_2(%arg0: i32, %arg1: i32) -> (i32, i32) {
    %c0_i32 = arith.constant 0 : i32
    %c0_i32_0 = arith.constant 0 : i32
    %c0_i32_1 = arith.constant 0 : i32
    return %c0_i32, %c0_i32_0 : i32, i32
  }
  func.func @transform_3(%arg0: i32, %arg1: i32) -> (i32, i32) {
    %c0_i32 = arith.constant 0 : i32
    %c0_i32_0 = arith.constant 0 : i32
    %c0_i32_1 = arith.constant 0 : i32
    return %c0_i32, %c0_i32_0 : i32, i32
  }
  func.func @transform_4(%arg0: i32, %arg1: i32) -> (i32, i32) {
    %c0_i32 = arith.constant 0 : i32
    %c0_i32_0 = arith.constant 0 : i32
    %c0_i32_1 = arith.constant 0 : i32
    return %c0_i32, %c0_i32_0 : i32, i32
  }
  func.func @transform_5(%arg0: i32, %arg1: i32) -> (i32, i32, i32) {
    %c0_i32 = arith.constant 0 : i32
    %c0_i32_0 = arith.constant 0 : i32
    return %arg0, %arg1, %c0_i32 : i32, i32, i32
  }
}

</mosaic_0001>

<llo_original>
// kernel: decoder_forward.5
$region0: #{decoder_forward.5}
  #allocation0 [shape = 'u32[]', space=smem, size = 0x4, offset = 0x4, fixed_abs, tag = 'smem constant byte address 0x4 - core index']
  #allocation1 [shape = 'u32[144,128]{1,0:T(1,128)}', space=vmem, size = 0x12000, scoped, tag = 'internal scratch']
  %s0 = inlined_call_operand.vmem [shape: f32[2,16,64], index: 0, kind: input, shape index: {}]
  %s1 = inlined_call_operand.vmem [shape: f32[1,64], index: 1, kind: input, shape index: {}]
  %s2 = inlined_call_operand.vmem [shape: f32[1,64], index: 2, kind: input, shape index: {}]
  %s3 = inlined_call_operand.vmem [shape: bf16[64,48], index: 3, kind: input, shape index: {}]
  %s4 = inlined_call_operand.vmem [shape: f32[1,48], index: 4, kind: input, shape index: {}]
  %s5 = inlined_call_operand.hbm [shape: f32[2,16,48], index: 5, kind: output, shape index: {}]
  %s6 = sld [smem:[#allocation0]]
  $region53: #{decoder_forward.5} parent=0
    _
  %s8 = ssub.s32 1, %s6
  %s9 = scalar_select 0, %s8, %s6
  $region1: #{decoder_forward.5} parent=0
    #allocation2 [shape = 'u8[16384]{0}', space=vmem, size = 0x4000, scoped, tag = 'output window, operand 0']
    #allocation3 [shape = 's32[2]{0}', space=sflag, size = 0x8, scoped, tag = 'scoped memory for decoder_forward.5']
    %10 = vsyncpa [#allocation3], 0
    %s11 = scalar_lea.sflag [#allocation3], 1
    %12 = vsyncpa %s11, 0
    loop: start=0, step=1, limit=4
    $region2: #{decoder_forward.5} parent=1 // loop_pre_header
      _
    $region3: #{decoder_forward.5} parent=1 // loop_header
      %s14 = sphi 0, %s18
      %p15 = scmp.ge.s32.totalorder %s14, 4
      %s21 = sphi 0, %s33
      %s22 = sphi 0, %s29
      %s23 = sphi 0, %s21
      %s24 = sphi 0, %s22
      %s25 = sphi 0, %s23
      %s26 = sphi 0, %s24
      %s38 = sphi 0, %s40
      %s41 = sphi 0, %s38
      %s42 = sphi 0, %s41
      %s58 = sphi 0, %s42
      %s62 = sphi 0, %s62
      %s64 = sphi 0, %s62
      %s65 = sphi 0, %s64
      %s79 = sphi 0, %s65
      %s83 = sphi 0, %s83
      %s85 = sphi 0, %s83
      %s86 = sphi 0, %s85
      %s100 = sphi 0, %s86
      %s104 = sphi 0, %s104
      %s106 = sphi 0, %s104
      %s107 = sphi 0, %s106
      %s121 = sphi 0, %s107
      %s125 = sphi 0, %s125
      %s127 = sphi 0, %s125
      %s128 = sphi 0, %s127
      %s142 = sphi 0, %s128
      %s150 = sphi 0, %s152
      %s153 = sphi 0, %s150
      %s154 = sphi 0, %s153
      %s170 = sphi 0, %s154
    $region4: #{decoder_forward.5} parent=1 // loop_header_branch
      %17 = sbr.rel (%p15) target = $region8
    $region5: #{decoder_forward.5} parent=1 // loop_body
      %s19 = ssub.s32 %s14, 1
      %s20 = ssub.s32 %s14, 2
      %s27 = sadd.s32 1, %s22
      %p28 = scmp.ge.s32.totalorder %s27, 1
      %s29 = scalar_select %p28, 0, %s27
      %s30 = sadd.s32 1, %s21
      %s31 = scalar_select %p28, %s30, %s21
      %p32 = scmp.ge.s32.totalorder %s31, 2
      %s33 = scalar_select %p32, 0, %s31
      %s34 = ssub.s32 %s21, %s33
      %s35 = ssub.s32 %s22, %s29
      %s36 = sor.u32 %s34, %s35
      %p37 = scmp.eq.s32.totalorder %s36, 0
      %s39 = sadd.s32 %s38, 1
      %s40 = scalar_select %p37, %s38, %s39
      %p43 = pneg %p37
      %p44 = scmp.eq.s32.totalorder %s14, 1
      %p45 = por %p43, %p44
      %p46 = scmp.ne.s32.totalorder %s38, %s41
      %p47 = scmp.eq.s32.totalorder %s14, 0
      %p48 = por %p46, %p47
      %p49 = scmp.ne.s32.totalorder %s38, %s41
      %p50 = scmp.eq.s32.totalorder %s19, 1
      %p51 = por %p49, %p50
      %p52 = scmp.ne.s32.totalorder %s41, %s42
      %p53 = scmp.eq.s32.totalorder %s19, 0
      %p54 = por %p52, %p53
      %p55 = scmp.ne.s32.totalorder %s41, %s42
      %p56 = scmp.eq.s32.totalorder %s20, 1
      %p57 = por %p55, %p56
      %p59 = scmp.ne.s32.totalorder %s42, %s58
      %p60 = scmp.eq.s32.totalorder %s20, 0
      %p61 = por %p59, %p60
      %s63 = sadd.s32 %s62, 1
      %p66 = scmp.eq.s32.totalorder %s14, 1
      %p67 = scmp.ne.s32.totalorder %s62, %s64
      %p68 = scmp.eq.s32.totalorder %s14, 0
      %p69 = por %p67, %p68
      %p70 = scmp.ne.s32.totalorder %s62, %s64
      %p71 = scmp.eq.s32.totalorder %s19, 1
      %p72 = por %p70, %p71
      %p73 = scmp.ne.s32.totalorder %s64, %s65
      %p74 = scmp.eq.s32.totalorder %s19, 0
      %p75 = por %p73, %p74
      %p76 = scmp.ne.s32.totalorder %s64, %s65
      %p77 = scmp.eq.s32.totalorder %s20, 1
      %p78 = por %p76, %p77
      %p80 = scmp.ne.s32.totalorder %s65, %s79
      %p81 = scmp.eq.s32.totalorder %s20, 0
      %p82 = por %p80, %p81
      %s84 = sadd.s32 %s83, 1
      %p87 = scmp.eq.s32.totalorder %s14, 1
      %p88 = scmp.ne.s32.totalorder %s83, %s85
      %p89 = scmp.eq.s32.totalorder %s14, 0
      %p90 = por %p88, %p89
      %p91 = scmp.ne.s32.totalorder %s83, %s85
      %p92 = scmp.eq.s32.totalorder %s19, 1
      %p93 = por %p91, %p92
      %p94 = scmp.ne.s32.totalorder %s85, %s86
      %p95 = scmp.eq.s32.totalorder %s19, 0
      %p96 = por %p94, %p95
      %p97 = scmp.ne.s32.totalorder %s85, %s86
      %p98 = scmp.eq.s32.totalorder %s20, 1
      %p99 = por %p97, %p98
      %p101 = scmp.ne.s32.totalorder %s86, %s100
      %p102 = scmp.eq.s32.totalorder %s20, 0
      %p103 = por %p101, %p102
      %s105 = sadd.s32 %s104, 1
      %p108 = scmp.eq.s32.totalorder %s14, 1
      %p109 = scmp.ne.s32.totalorder %s104, %s106
      %p110 = scmp.eq.s32.totalorder %s14, 0
      %p111 = por %p109, %p110
      %p112 = scmp.ne.s32.totalorder %s104, %s106
      %p113 = scmp.eq.s32.totalorder %s19, 1
      %p114 = por %p112, %p113
      %p115 = scmp.ne.s32.totalorder %s106, %s107
      %p116 = scmp.eq.s32.totalorder %s19, 0
      %p117 = por %p115, %p116
      %p118 = scmp.ne.s32.totalorder %s106, %s107
      %p119 = scmp.eq.s32.totalorder %s20, 1
      %p120 = por %p118, %p119
      %p122 = scmp.ne.s32.totalorder %s107, %s121
      %p123 = scmp.eq.s32.totalorder %s20, 0
      %p124 = por %p122, %p123
      %s126 = sadd.s32 %s125, 1
      %p129 = scmp.eq.s32.totalorder %s14, 1
      %p130 = scmp.ne.s32.totalorder %s125, %s127
      %p131 = scmp.eq.s32.totalorder %s14, 0
      %p132 = por %p130, %p131
      %p133 = scmp.ne.s32.totalorder %s125, %s127
      %p134 = scmp.eq.s32.totalorder %s19, 1
      %p135 = por %p133, %p134
      %p136 = scmp.ne.s32.totalorder %s127, %s128
      %p137 = scmp.eq.s32.totalorder %s19, 0
      %p138 = por %p136, %p137
      %p139 = scmp.ne.s32.totalorder %s127, %s128
      %p140 = scmp.eq.s32.totalorder %s20, 1
      %p141 = por %p139, %p140
      %p143 = scmp.ne.s32.totalorder %s128, %s142
      %p144 = scmp.eq.s32.totalorder %s20, 0
      %p145 = por %p143, %p144
      %s146 = ssub.s32 %s21, %s33
      %s147 = ssub.s32 %s22, %s29
      %s148 = sor.u32 %s146, %s147
      %p149 = scmp.eq.s32.totalorder %s148, 0
      %s151 = sadd.s32 %s150, 1
      %s152 = scalar_select %p149, %s150, %s151
      %p155 = pneg %p149
      %p156 = scmp.eq.s32.totalorder %s14, 1
      %p157 = por %p155, %p156
      %p158 = scmp.ne.s32.totalorder %s150, %s153
      %p159 = scmp.eq.s32.totalorder %s14, 0
      %p160 = por %p158, %p159
      %p161 = scmp.ne.s32.totalorder %s150, %s153
      %p162 = scmp.eq.s32.totalorder %s19, 1
      %p163 = por %p161, %p162
      %p164 = scmp.ne.s32.totalorder %s153, %s154
      %p165 = scmp.eq.s32.totalorder %s19, 0
      %p166 = por %p164, %p165
      %p167 = scmp.ne.s32.totalorder %s153, %s154
      %p168 = scmp.eq.s32.totalorder %s20, 1
      %p169 = por %p167, %p168
      %p171 = scmp.ne.s32.totalorder %s154, %s170
      %p172 = scmp.eq.s32.totalorder %s20, 0
      %p173 = por %p171, %p172
      %p174 = scmp.le.s32.totalorder 1, %s14
      %p175 = scmp.lt.s32.totalorder %s14, 3
      %p176 = pnand %p174, %p175
      %p177 = pneg %p176
      // Predicated region
      $region9: #{decoder_forward.5} parent=5 // pred_check
        _
      $region10: #{decoder_forward.5} parent=5 // pred_check_branch
        %179 = sbr.rel (%p176) target = $region12
      $region11: #{decoder_forward.5} parent=5 // pred_region
        %s180 = ssub.s32 %s14, 1
        // Predicated region
        $region13: #{decoder_forward.5} parent=11 // pred_check
          %p181 = pneg %p75
        $region14: #{decoder_forward.5} parent=11 // pred_check_branch
          %183 = sbr.rel (%p181) target = $region16
        $region15: #{decoder_forward.5} parent=11 // pred_region
          _
        $region16: #{decoder_forward.5} parent=11 // pred_fallthru
          _
        // Predicated region
        $region17: #{decoder_forward.5} parent=11 // pred_check
          %p184 = pneg %p96
        $region18: #{decoder_forward.5} parent=11 // pred_check_branch
          %186 = sbr.rel (%p184) target = $region20
        $region19: #{decoder_forward.5} parent=11 // pred_region
          _
        $region20: #{decoder_forward.5} parent=11 // pred_fallthru
          _
        // Predicated region
        $region21: #{decoder_forward.5} parent=11 // pred_check
          %p187 = pneg %p117
        $region22: #{decoder_forward.5} parent=11 // pred_check_branch
          %189 = sbr.rel (%p187) target = $region24
        $region23: #{decoder_forward.5} parent=11 // pred_region
          _
        $region24: #{decoder_forward.5} parent=11 // pred_fallthru
          _
        // Predicated region
        $region25: #{decoder_forward.5} parent=11 // pred_check
          %p190 = pneg %p138
        $region26: #{decoder_forward.5} parent=11 // pred_check_branch
          %192 = sbr.rel (%p190) target = $region28
        $region27: #{decoder_forward.5} parent=11 // pred_region
          _
        $region28: #{decoder_forward.5} parent=11 // pred_fallthru
          _
      $region12: #{decoder_forward.5} parent=5 // pred_fallthru
        _
      %p193 = scmp.lt.s32.totalorder %s14, 2
      // Predicated region
      $region29: #{decoder_forward.5} parent=5 // pred_check
        %p194 = pneg %p193
      $region30: #{decoder_forward.5} parent=5 // pred_check_branch
        %196 = sbr.rel (%p194) target = $region32
      $region31: #{decoder_forward.5} parent=5 // pred_region
        // Predicated region
        $region33: #{decoder_forward.5} parent=31 // pred_check
          %p197 = pneg %p48
        $region34: #{decoder_forward.5} parent=31 // pred_check_branch
          %199 = sbr.rel (%p197) target = $region36
        $region35: #{decoder_forward.5} parent=31 // pred_region
          %s200 = smul.u32 2, %s22
          %p201 = scmp.lt.s32.totalorder %s21, 1
          %s202 = scalar_select %p201, %s21, 1
          %p203 = scmp.lt.s32.totalorder %s200, 1
          %s204 = scalar_select %p203, %s200, 1
          %s205 = smul.addr %s202, 2
          %s206 = sadd.s32 %s204, %s205
          %s207 = smul.addr %s206, 8
          %s208 = scalar_lea.vmem %s0, %s207
          %s209 = smul.u32 2, %s22
        $region36: #{decoder_forward.5} parent=31 // pred_fallthru
          _
      $region32: #{decoder_forward.5} parent=5 // pred_fallthru
        _
      %p210 = scmp.le.s32.totalorder 1, %s14
      %p211 = scmp.lt.s32.totalorder %s14, 3
      %p212 = pnand %p210, %p211
      %p213 = pneg %p212
      // Predicated region
      $region37: #{decoder_forward.5} parent=5 // pred_check
        _
      $region38: #{decoder_forward.5} parent=5 // pred_check_branch
        %215 = sbr.rel (%p212) target = $region40
      $region39: #{decoder_forward.5} parent=5 // pred_region
        %s216 = ssub.s32 %s14, 1
        %s217 = smul.u32 2, %s24
        %p218 = scmp.lt.s32.totalorder %s23, 1
        %s219 = scalar_select %p218, %s23, 1
        %p220 = scmp.lt.s32.totalorder %s217, 1
        %s221 = scalar_select %p220, %s217, 1
        %s222 = smul.addr %s219, 2
        %s223 = sadd.s32 %s221, %s222
        %s224 = smul.addr %s223, 8
        %s225 = scalar_lea.vmem %s0, %s224
        %p226 = pneg %p54
        %p227 = pneg %p51
        %p228 = pneg %p75
        %p229 = pneg %p72
        %p230 = pneg %p96
        %p231 = pneg %p93
        %p232 = pneg %p117
        %p233 = pneg %p114
        %p234 = pneg %p138
        %p235 = pneg %p135
        %p236 = pneg %p166
        %p237 = pneg %p163
        %s238 = sand.u32 %s153, 1
        %s239 = scalar_lea.sflag [#allocation3], %s238
        %s240 = sand.u32 %s153, 1
        %s241 = smul.addr %s240, 16
        %s242 = scalar_lea.vmem [#allocation2], %s241
        %s243 = smul.u32 2, %s24
        %p244 = scmp.lt.s32.totalorder %s23, 1
        %s245 = scalar_select %p244, %s23, 1
        %p246 = scmp.lt.s32.totalorder %s243, 1
        %s247 = scalar_select %p246, %s243, 1
        %s248 = smul.addr %s245, 2
        %s249 = sadd.s32 %s247, %s248
        %s250 = smul.addr %s249, 8
        %s251 = scalar_lea.vmem %s0, %s250
        %s252 = smul.u32 2, %s24
        %s253 = smul.u32 2, %s24
        %v255 = vld [vmem:[%s251] sm:$0xff]
        %v256 = vld [vmem:[%s251 + $0x8] sm:$0xff]
        %v257 = vld [vmem:[%s1] sm:$0x1]
        %v258 = vld [vmem:[%s2] sm:$0x1]
        %vm259 = vcmask 523264
        %v260 = vsel %vm259, %v255, 0.0
        %261 = vadd.xlane.f32.xlu0 %v260
        %v262 = vpop.xlane.xlu0 %261
        %v263 = vsel %vm259, %v256, 0.0
        %264 = vadd.xlane.f32.xlu0 %v263
        %v265 = vpop.xlane.xlu0 %264
        %v266 = vrcp.pop 64.0
        %v267 = vmul.f32 %v262, %v266
        %v268 = vmul.f32 %v265, %v266
        %v269 = vsub.f32 %v255, %v267
        %v270 = vsub.f32 %v256, %v268
        %v271 = vmul.f32 %v269, %v269
        %v272 = vmul.f32 %v270, %v270
        %v273 = vsel %vm259, %v271, 0.0
        %274 = vadd.xlane.f32.xlu0 %v273
        %v275 = vpop.xlane.xlu0 %274
        %v276 = vsel %vm259, %v272, 0.0
        %277 = vadd.xlane.f32.xlu0 %v276
        %v278 = vpop.xlane.xlu0 %277
        %v279 = vmul.f32 %v275, %v266
        %v280 = vmul.f32 %v278, %v266
        %v281 = vadd.f32 %v279, 1e-06
        %v282 = vadd.f32 %v280, 1e-06
        %v283 = vrsqrt.pop %v281
        %v284 = vrsqrt.pop %v282
        %v285 = vmul.f32 %v269, %v283
        %v286 = vmul.f32 %v270, %v284
        %v288 = vlaneseq
        %v289 = vshrl.u32 %v288, 7
        %v290 = vsub.s32 0, %v289
        %v291 = vrot.slane %v257, %v290
        %v293 = vmul.f32 %v285, %v291
        %v294 = vmul.f32 %v286, %v291
        %v296 = vlaneseq
        %v297 = vshrl.u32 %v296, 7
        %v298 = vsub.s32 0, %v297
        %v299 = vrot.slane %v258, %v298
        %v301 = vadd.f32 %v293, %v299
        %v302 = vadd.f32 %v294, %v299
        %v303 = vpack.c.bf16 %v302, %v301
        %v304 = vld [vmem:[%s3] sm:$0xf]
        %v305 = vld [vmem:[%s3 + $0x4] sm:$0xf]
        %v306 = vld [vmem:[%s3 + $0x8] sm:$0xf]
        %v307 = vld [vmem:[%s3 + $0xc] sm:$0xf]
        %v308 = vld [vmem:[%s3 + $0x10] sm:$0xf]
        %v309 = vld [vmem:[%s3 + $0x14] sm:$0xf]
        %v310 = vld [vmem:[%s3 + $0x18] sm:$0xf]
        %v311 = vld [vmem:[%s3 + $0x1c] sm:$0xf]
        %v312 = vld [vmem:[%s4] sm:$0x1]
        %v314 = vlaneseq
        %v315 = vshrl.u32 %v314, 7
        %v316 = vsub.s32 0, %v315
        %v317 = vrot.slane %v312, %v316
        %v327 = vunpack.c.l.b16 %v304
        %v328 = vunpack.c.l.b16 %v305
        %v329 = vunpack.c.l.b16 %v306
        %v330 = vunpack.c.l.b16 %v307
        %v331 = vunpack.c.l.b16 %v308
        %v332 = vunpack.c.l.b16 %v309
        %v333 = vunpack.c.l.b16 %v310
        %v334 = vunpack.c.l.b16 %v311
        %v335 = vpack.c.b16 %v328, %v327
        %v336 = vpack.c.b16 %v330, %v329
        %v337 = vpack.c.b16 %v332, %v331
        %v338 = vpack.c.b16 %v334, %v333
        %v344 = vsel %vm259, %v303, 0
        %346 = vmatprep.subr.bf16.mxu0 0
        %347 = vmatpush1.bf16.msra.mxu0 %v335
        %348 = vmatprep.subr.bf16.mxu0 0
        %349 = vmatpush1.bf16.msra.mxu0 %v336
        %350 = vmatprep.subr.bf16.mxu0 0
        %351 = vmatpush1.bf16.msra.mxu0 %v337
        %352 = vmatprep.subr.bf16.mxu0 0
        %353 = vmatpush1.bf16.msra.mxu0 %v338
        %354 = vmatprep.subr.bf16.mxu0 0
        %355 = vmatpush1.bf16.msra.mxu0 0
        %356 = vmatprep.subr.bf16.mxu0 0
        %357 = vmatpush1.bf16.msra.mxu0 0
        %358 = vmatprep.subr.bf16.mxu0 0
        %359 = vmatpush1.bf16.msra.mxu0 0
        %360 = vmatprep.subr.bf16.mxu0 0
        %361 = vmatpush1.bf16.msra.mxu0 0
        %362 = vmatprep.subr.bf16.mxu0 0
        %363 = vmatpush1.bf16.msra.mxu0 0
        %364 = vmatprep.subr.bf16.mxu0 0
        %365 = vmatpush1.bf16.msra.mxu0 0
        %366 = vmatprep.subr.bf16.mxu0 0
        %367 = vmatpush1.bf16.msra.mxu0 0
        %368 = vmatprep.subr.bf16.mxu0 0
        %369 = vmatpush1.bf16.msra.mxu0 0
        %370 = vmatprep.subr.bf16.mxu0 0
        %371 = vmatpush1.bf16.msra.mxu0 0
        %372 = vmatprep.subr.bf16.mxu0 0
        %373 = vmatpush1.bf16.msra.mxu0 0
        %374 = vmatprep.subr.bf16.mxu0 0
        %375 = vmatpush1.bf16.msra.mxu0 0
        %376 = vmatprep.subr.bf16.mxu0 0
        %377 = vmatpush1.bf16.msra.mxu0 0
        %378 = vmatprep.mubr.bf16.mxu0 0
        %379 = vmatmul.mubr.bf16.gmra.mrb[0].mxu0 %v344
        %v380 = vpop.f32.mrb[0].mxu0
        %v381 = vadd.f32 %v317, %v380
        %v382 = vpop.f32.mrb[0].mxu0
        %v383 = vpop.f32.mrb[0].mxu0
        %v384 = vadd.f32 %v317, %v383
        %v385 = vpop.f32.mrb[0].mxu0
        %386 = vdwg.mxu0
        %vm387 = vcmask 392192
        %388 = vst.msk [vmem:[%s242] sm:$0xff] %vm387, %v381
        %389 = vst.msk [vmem:[%s242 + $0x8] sm:$0xff] %vm387, %v384
        %s390 = sand.u32 %s153, 1
        %s391 = scalar_lea.sflag [#allocation3], %s390
        %s392 = sand.u32 %s153, 1
        %s393 = smul.addr %s392, 16
        %s394 = scalar_lea.vmem [#allocation2], %s393
        // Predicated region
        $region41: #{decoder_forward.5} parent=39 // pred_check
          %p395 = pneg %p163
        $region42: #{decoder_forward.5} parent=39 // pred_check_branch
          %397 = sbr.rel (%p395) target = $region44
        $region43: #{decoder_forward.5} parent=39 // pred_region
          %s398 = smul.u32 2, %s24
          %s400 = ssub.s32 256, 256
          %401 = vsyncadd %s391, %s400
          %s402 = smul.addr %s23, 2
          %s403 = sadd.s32 %s398, %s402
          %s404 = smul.addr %s403, 128
          %s405 = scalar_lea.hbm %s5, %s404
          %s406 = sshll.u32 %s394, 4
          %s407 = int_to_ptr.vmem [resolvable:$true] %s406
          %412 = dma.vmem_to_hbm [thread:$0]  %s407, 256, %s405, %s391, 128, 128, 8
        $region44: #{decoder_forward.5} parent=39 // pred_fallthru
          _
      $region40: #{decoder_forward.5} parent=5 // pred_fallthru
        _
      %p413 = scmp.le.s32.totalorder 2, %s14
      // Predicated region
      $region45: #{decoder_forward.5} parent=5 // pred_check
        %p414 = pneg %p413
      $region46: #{decoder_forward.5} parent=5 // pred_check_branch
        %416 = sbr.rel (%p414) target = $region48
      $region47: #{decoder_forward.5} parent=5 // pred_region
        %s417 = ssub.s32 %s14, 2
        // Predicated region
        $region49: #{decoder_forward.5} parent=47 // pred_check
          %p418 = pneg %p169
        $region50: #{decoder_forward.5} parent=47 // pred_check_branch
          %420 = sbr.rel (%p418) target = $region52
        $region51: #{decoder_forward.5} parent=47 // pred_region
          %s421 = sand.u32 %s154, 1
          %s422 = scalar_lea.sflag [#allocation3], %s421
          %s423 = sand.u32 %s154, 1
          %s424 = smul.addr %s423, 16
          %s425 = scalar_lea.vmem [#allocation2], %s424
          %426 = dma.done %s422, 256
        $region52: #{decoder_forward.5} parent=47 // pred_fallthru
          _
      $region48: #{decoder_forward.5} parent=5 // pred_fallthru
        _
    $region6: #{decoder_forward.5} parent=1 // loop_footer
      %s18 = sadd.s32 1, %s14
    $region7: #{decoder_forward.5} parent=1 // loop_footer_branch
      %13 = sbr.rel target = $region3
    $region8: #{decoder_forward.5} parent=1 // loop_exit
      _
    %427 = vsyncpa [#allocation3], 1
    %s428 = scalar_lea.sflag [#allocation3], 1
    %429 = vsyncpa %s428, 1

// kernel: decoder_forward.3
$region0: #{decoder_forward.3}
  #allocation0 [shape = 'u32[]', space=smem, size = 0x4, offset = 0x4, fixed_abs, tag = 'smem constant byte address 0x4 - core index']
  #allocation1 [shape = 'u32[144,128]{1,0:T(1,128)}', space=vmem, size = 0x12000, scoped, tag = 'internal scratch']
  #allocation2 [shape = 'bf16[16,64]{1,0:T(16,128)(2,1)}', space=vmem, size = 0x1000, scoped, tag = 'scratch operand']
  #allocation3 [shape = 'bf16[16,64]{1,0:T(16,128)(2,1)}', space=vmem, size = 0x1000, scoped, tag = 'scratch operand']
  #allocation4 [shape = 'bf16[16,64]{1,0:T(16,128)(2,1)}', space=vmem, size = 0x1000, scoped, tag = 'scratch operand']
  %s0 = inlined_call_operand.vmem [shape: f32[2,16,64], index: 0, kind: input, shape index: {}, may-alias: {0,1}]
  %s1 = inlined_call_operand.vmem [shape: f32[2,16,64], index: 1, kind: input, shape index: {}, may-alias: {0,1}]
  %s2 = inlined_call_operand.vmem [shape: f32[1,64], index: 2, kind: input, shape index: {}]
  %s3 = inlined_call_operand.vmem [shape: f32[1,64], index: 3, kind: input, shape index: {}]
  %s4 = inlined_call_operand.vmem [shape: bf16[64,192], index: 4, kind: input, shape index: {}]
  %s5 = inlined_call_operand.vmem [shape: f32[1,192], index: 5, kind: input, shape index: {}]
  %s6 = inlined_call_operand.vmem [shape: bf16[64,64], index: 6, kind: input, shape index: {}]
  %s7 = inlined_call_operand.vmem [shape: f32[1,64], index: 7, kind: input, shape index: {}]
  %s8 = inlined_call_operand.vmem [shape: f32[1,64], index: 8, kind: input, shape index: {}]
  %s9 = inlined_call_operand.vmem [shape: f32[1,64], index: 9, kind: input, shape index: {}]
  %s10 = inlined_call_operand.vmem [shape: bf16[64,256], index: 10, kind: input, shape index: {}]
  %s11 = inlined_call_operand.vmem [shape: f32[1,256], index: 11, kind: input, shape index: {}]
  %s12 = inlined_call_operand.vmem [shape: bf16[256,64], index: 12, kind: input, shape index: {}]
  %s13 = inlined_call_operand.vmem [shape: f32[1,64], index: 13, kind: input, shape index: {}]
  %s14 = inlined_call_operand.vmem [shape: f32[2,16,64], index: 14, kind: output, shape index: {}]
  %s15 = sld [smem:[#allocation0]]
  $region93: #{decoder_forward.3} parent=0
    _
  %s17 = ssub.s32 1, %s15
  %s18 = scalar_select 0, %s17, %s15
  loop: start=0, step=1, limit=4
  $region2: #{decoder_forward.3} parent=0 // loop_pre_header
    _
  $region3: #{decoder_forward.3} parent=0 // loop_header
    %s20 = sphi 0, %s24
    %p21 = scmp.ge.s32.totalorder %s20, 4
    %s27 = sphi 0, %s39
    %s28 = sphi 0, %s35
    %s29 = sphi 0, %s27
    %s30 = sphi 0, %s28
    %s31 = sphi 0, %s29
    %s32 = sphi 0, %s30
    %s42 = sphi 0, %s44
    %s45 = sphi 0, %s42
    %s46 = sphi 0, %s45
    %s62 = sphi 0, %s46
    %s70 = sphi 0, %s72
    %s73 = sphi 0, %s70
    %s74 = sphi 0, %s73
    %s90 = sphi 0, %s74
    %s94 = sphi 0, %s94
    %s96 = sphi 0, %s94
    %s97 = sphi 0, %s96
    %s111 = sphi 0, %s97
    %s115 = sphi 0, %s115
    %s117 = sphi 0, %s115
    %s118 = sphi 0, %s117
    %s132 = sphi 0, %s118
    %s136 = sphi 0, %s136
    %s138 = sphi 0, %s136
    %s139 = sphi 0, %s138
    %s153 = sphi 0, %s139
    %s157 = sphi 0, %s157
    %s159 = sphi 0, %s157
    %s160 = sphi 0, %s159
    %s174 = sphi 0, %s160
    %s178 = sphi 0, %s178
    %s180 = sphi 0, %s178
    %s181 = sphi 0, %s180
    %s195 = sphi 0, %s181
    %s199 = sphi 0, %s199
    %s201 = sphi 0, %s199
    %s202 = sphi 0, %s201
    %s216 = sphi 0, %s202
    %s220 = sphi 0, %s220
    %s222 = sphi 0, %s220
    %s223 = sphi 0, %s222
    %s237 = sphi 0, %s223
    %s241 = sphi 0, %s241
    %s243 = sphi 0, %s241
    %s244 = sphi 0, %s243
    %s258 = sphi 0, %s244
    %s262 = sphi 0, %s262
    %s264 = sphi 0, %s262
    %s265 = sphi 0, %s264
    %s279 = sphi 0, %s265
    %s283 = sphi 0, %s283
    %s285 = sphi 0, %s283
    %s286 = sphi 0, %s285
    %s300 = sphi 0, %s286
    %s304 = sphi 0, %s304
    %s306 = sphi 0, %s304
    %s307 = sphi 0, %s306
    %s321 = sphi 0, %s307
    %s325 = sphi 0, %s325
    %s327 = sphi 0, %s325
    %s328 = sphi 0, %s327
    %s342 = sphi 0, %s328
    %s350 = sphi 0, %s352
    %s353 = sphi 0, %s350
    %s354 = sphi 0, %s353
    %s370 = sphi 0, %s354
  $region4: #{decoder_forward.3} parent=0 // loop_header_branch
    %23 = sbr.rel (%p21) target = $region8
  $region5: #{decoder_forward.3} parent=0 // loop_body
    %s25 = ssub.s32 %s20, 1
    %s26 = ssub.s32 %s20, 2
    %s33 = sadd.s32 1, %s28
    %p34 = scmp.ge.s32.totalorder %s33, 1
    %s35 = scalar_select %p34, 0, %s33
    %s36 = sadd.s32 1, %s27
    %s37 = scalar_select %p34, %s36, %s27
    %p38 = scmp.ge.s32.totalorder %s37, 2
    %s39 = scalar_select %p38, 0, %s37
    %s40 = ssub.s32 %s27, %s39
    %p41 = scmp.eq.s32.totalorder %s40, 0
    %s43 = sadd.s32 %s42, 1
    %s44 = scalar_select %p41, %s42, %s43
    %p47 = pneg %p41
    %p48 = scmp.eq.s32.totalorder %s20, 1
    %p49 = por %p47, %p48
    %p50 = scmp.ne.s32.totalorder %s42, %s45
    %p51 = scmp.eq.s32.totalorder %s20, 0
    %p52 = por %p50, %p51
    %p53 = scmp.ne.s32.totalorder %s42, %s45
    %p54 = scmp.eq.s32.totalorder %s25, 1
    %p55 = por %p53, %p54
    %p56 = scmp.ne.s32.totalorder %s45, %s46
    %p57 = scmp.eq.s32.totalorder %s25, 0
    %p58 = por %p56, %p57
    %p59 = scmp.ne.s32.totalorder %s45, %s46
    %p60 = scmp.eq.s32.totalorder %s26, 1
    %p61 = por %p59, %p60
    %p63 = scmp.ne.s32.totalorder %s46, %s62
    %p64 = scmp.eq.s32.totalorder %s26, 0
    %p65 = por %p63, %p64
    %s66 = ssub.s32 %s27, %s39
    %s67 = ssub.s32 %s28, %s35
    %s68 = sor.u32 %s66, %s67
    %p69 = scmp.eq.s32.totalorder %s68, 0
    %s71 = sadd.s32 %s70, 1
    %s72 = scalar_select %p69, %s70, %s71
    %p75 = pneg %p69
    %p76 = scmp.eq.s32.totalorder %s20, 1
    %p77 = por %p75, %p76
    %p78 = scmp.ne.s32.totalorder %s70, %s73
    %p79 = scmp.eq.s32.totalorder %s20, 0
    %p80 = por %p78, %p79
    %p81 = scmp.ne.s32.totalorder %s70, %s73
    %p82 = scmp.eq.s32.totalorder %s25, 1
    %p83 = por %p81, %p82
    %p84 = scmp.ne.s32.totalorder %s73, %s74
    %p85 = scmp.eq.s32.totalorder %s25, 0
    %p86 = por %p84, %p85
    %p87 = scmp.ne.s32.totalorder %s73, %s74
    %p88 = scmp.eq.s32.totalorder %s26, 1
    %p89 = por %p87, %p88
    %p91 = scmp.ne.s32.totalorder %s74, %s90
    %p92 = scmp.eq.s32.totalorder %s26, 0
    %p93 = por %p91, %p92
    %s95 = sadd.s32 %s94, 1
    %p98 = scmp.eq.s32.totalorder %s20, 1
    %p99 = scmp.ne.s32.totalorder %s94, %s96
    %p100 = scmp.eq.s32.totalorder %s20, 0
    %p101 = por %p99, %p100
    %p102 = scmp.ne.s32.totalorder %s94, %s96
    %p103 = scmp.eq.s32.totalorder %s25, 1
    %p104 = por %p102, %p103
    %p105 = scmp.ne.s32.totalorder %s96, %s97
    %p106 = scmp.eq.s32.totalorder %s25, 0
    %p107 = por %p105, %p106
    %p108 = scmp.ne.s32.totalorder %s96, %s97
    %p109 = scmp.eq.s32.totalorder %s26, 1
    %p110 = por %p108, %p109
    %p112 = scmp.ne.s32.totalorder %s97, %s111
    %p113 = scmp.eq.s32.totalorder %s26, 0
    %p114 = por %p112, %p113
    %s116 = sadd.s32 %s115, 1
    %p119 = scmp.eq.s32.totalorder %s20, 1
    %p120 = scmp.ne.s32.totalorder %s115, %s117
    %p121 = scmp.eq.s32.totalorder %s20, 0
    %p122 = por %p120, %p121
    %p123 = scmp.ne.s32.totalorder %s115, %s117
    %p124 = scmp.eq.s32.totalorder %s25, 1
    %p125 = por %p123, %p124
    %p126 = scmp.ne.s32.totalorder %s117, %s118
    %p127 = scmp.eq.s32.totalorder %s25, 0
    %p128 = por %p126, %p127
    %p129 = scmp.ne.s32.totalorder %s117, %s118
    %p130 = scmp.eq.s32.totalorder %s26, 1
    %p131 = por %p129, %p130
    %p133 = scmp.ne.s32.totalorder %s118, %s132
    %p134 = scmp.eq.s32.totalorder %s26, 0
    %p135 = por %p133, %p134
    %s137 = sadd.s32 %s136, 1
    %p140 = scmp.eq.s32.totalorder %s20, 1
    %p141 = scmp.ne.s32.totalorder %s136, %s138
    %p142 = scmp.eq.s32.totalorder %s20, 0
    %p143 = por %p141, %p142
    %p144 = scmp.ne.s32.totalorder %s136, %s138
    %p145 = scmp.eq.s32.totalorder %s25, 1
    %p146 = por %p144, %p145
    %p147 = scmp.ne.s32.totalorder %s138, %s139
    %p148 = scmp.eq.s32.totalorder %s25, 0
    %p149 = por %p147, %p148
    %p150 = scmp.ne.s32.totalorder %s138, %s139
    %p151 = scmp.eq.s32.totalorder %s26, 1
    %p152 = por %p150, %p151
    %p154 = scmp.ne.s32.totalorder %s139, %s153
    %p155 = scmp.eq.s32.totalorder %s26, 0
    %p156 = por %p154, %p155
    %s158 = sadd.s32 %s157, 1
    %p161 = scmp.eq.s32.totalorder %s20, 1
    %p162 = scmp.ne.s32.totalorder %s157, %s159
    %p163 = scmp.eq.s32.totalorder %s20, 0
    %p164 = por %p162, %p163
    %p165 = scmp.ne.s32.totalorder %s157, %s159
    %p166 = scmp.eq.s32.totalorder %s25, 1
    %p167 = por %p165, %p166
    %p168 = scmp.ne.s32.totalorder %s159, %s160
    %p169 = scmp.eq.s32.totalorder %s25, 0
    %p170 = por %p168, %p169
    %p171 = scmp.ne.s32.totalorder %s159, %s160
    %p172 = scmp.eq.s32.totalorder %s26, 1
    %p173 = por %p171, %p172
    %p175 = scmp.ne.s32.totalorder %s160, %s174
    %p176 = scmp.eq.s32.totalorder %s26, 0
    %p177 = por %p175, %p176
    %s179 = sadd.s32 %s178, 1
    %p182 = scmp.eq.s32.totalorder %s20, 1
    %p183 = scmp.ne.s32.totalorder %s178, %s180
    %p184 = scmp.eq.s32.totalorder %s20, 0
    %p185 = por %p183, %p184
    %p186 = scmp.ne.s32.totalorder %s178, %s180
    %p187 = scmp.eq.s32.totalorder %s25, 1
    %p188 = por %p186, %p187
    %p189 = scmp.ne.s32.totalorder %s180, %s181
    %p190 = scmp.eq.s32.totalorder %s25, 0
    %p191 = por %p189, %p190
    %p192 = scmp.ne.s32.totalorder %s180, %s181
    %p193 = scmp.eq.s32.totalorder %s26, 1
    %p194 = por %p192, %p193
    %p196 = scmp.ne.s32.totalorder %s181, %s195
    %p197 = scmp.eq.s32.totalorder %s26, 0
    %p198 = por %p196, %p197
    %s200 = sadd.s32 %s199, 1
    %p203 = scmp.eq.s32.totalorder %s20, 1
    %p204 = scmp.ne.s32.totalorder %s199, %s201
    %p205 = scmp.eq.s32.totalorder %s20, 0
    %p206 = por %p204, %p205
    %p207 = scmp.ne.s32.totalorder %s199, %s201
    %p208 = scmp.eq.s32.totalorder %s25, 1
    %p209 = por %p207, %p208
    %p210 = scmp.ne.s32.totalorder %s201, %s202
    %p211 = scmp.eq.s32.totalorder %s25, 0
    %p212 = por %p210, %p211
    %p213 = scmp.ne.s32.totalorder %s201, %s202
    %p214 = scmp.eq.s32.totalorder %s26, 1
    %p215 = por %p213, %p214
    %p217 = scmp.ne.s32.totalorder %s202, %s216
    %p218 = scmp.eq.s32.totalorder %s26, 0
    %p219 = por %p217, %p218
    %s221 = sadd.s32 %s220, 1
    %p224 = scmp.eq.s32.totalorder %s20, 1
    %p225 = scmp.ne.s32.totalorder %s220, %s222
    %p226 = scmp.eq.s32.totalorder %s20, 0
    %p227 = por %p225, %p226
    %p228 = scmp.ne.s32.totalorder %s220, %s222
    %p229 = scmp.eq.s32.totalorder %s25, 1
    %p230 = por %p228, %p229
    %p231 = scmp.ne.s32.totalorder %s222, %s223
    %p232 = scmp.eq.s32.totalorder %s25, 0
    %p233 = por %p231, %p232
    %p234 = scmp.ne.s32.totalorder %s222, %s223
    %p235 = scmp.eq.s32.totalorder %s26, 1
    %p236 = por %p234, %p235
    %p238 = scmp.ne.s32.totalorder %s223, %s237
    %p239 = scmp.eq.s32.totalorder %s26, 0
    %p240 = por %p238, %p239
    %s242 = sadd.s32 %s241, 1
    %p245 = scmp.eq.s32.totalorder %s20, 1
    %p246 = scmp.ne.s32.totalorder %s241, %s243
    %p247 = scmp.eq.s32.totalorder %s20, 0
    %p248 = por %p246, %p247
    %p249 = scmp.ne.s32.totalorder %s241, %s243
    %p250 = scmp.eq.s32.totalorder %s25, 1
    %p251 = por %p249, %p250
    %p252 = scmp.ne.s32.totalorder %s243, %s244
    %p253 = scmp.eq.s32.totalorder %s25, 0
    %p254 = por %p252, %p253
    %p255 = scmp.ne.s32.totalorder %s243, %s244
    %p256 = scmp.eq.s32.totalorder %s26, 1
    %p257 = por %p255, %p256
    %p259 = scmp.ne.s32.totalorder %s244, %s258
    %p260 = scmp.eq.s32.totalorder %s26, 0
    %p261 = por %p259, %p260
    %s263 = sadd.s32 %s262, 1
    %p266 = scmp.eq.s32.totalorder %s20, 1
    %p267 = scmp.ne.s32.totalorder %s262, %s264
    %p268 = scmp.eq.s32.totalorder %s20, 0
    %p269 = por %p267, %p268
    %p270 = scmp.ne.s32.totalorder %s262, %s264
    %p271 = scmp.eq.s32.totalorder %s25, 1
    %p272 = por %p270, %p271
    %p273 = scmp.ne.s32.totalorder %s264, %s265
    %p274 = scmp.eq.s32.totalorder %s25, 0
    %p275 = por %p273, %p274
    %p276 = scmp.ne.s32.totalorder %s264, %s265
    %p277 = scmp.eq.s32.totalorder %s26, 1
    %p278 = por %p276, %p277
    %p280 = scmp.ne.s32.totalorder %s265, %s279
    %p281 = scmp.eq.s32.totalorder %s26, 0
    %p282 = por %p280, %p281
    %s284 = sadd.s32 %s283, 1
    %p287 = scmp.eq.s32.totalorder %s20, 1
    %p288 = scmp.ne.s32.totalorder %s283, %s285
    %p289 = scmp.eq.s32.totalorder %s20, 0
    %p290 = por %p288, %p289
    %p291 = scmp.ne.s32.totalorder %s283, %s285
    %p292 = scmp.eq.s32.totalorder %s25, 1
    %p293 = por %p291, %p292
    %p294 = scmp.ne.s32.totalorder %s285, %s286
    %p295 = scmp.eq.s32.totalorder %s25, 0
    %p296 = por %p294, %p295
    %p297 = scmp.ne.s32.totalorder %s285, %s286
    %p298 = scmp.eq.s32.totalorder %s26, 1
    %p299 = por %p297, %p298
    %p301 = scmp.ne.s32.totalorder %s286, %s300
    %p302 = scmp.eq.s32.totalorder %s26, 0
    %p303 = por %p301, %p302
    %s305 = sadd.s32 %s304, 1
    %p308 = scmp.eq.s32.totalorder %s20, 1
    %p309 = scmp.ne.s32.totalorder %s304, %s306
    %p310 = scmp.eq.s32.totalorder %s20, 0
    %p311 = por %p309, %p310
    %p312 = scmp.ne.s32.totalorder %s304, %s306
    %p313 = scmp.eq.s32.totalorder %s25, 1
    %p314 = por %p312, %p313
    %p315 = scmp.ne.s32.totalorder %s306, %s307
    %p316 = scmp.eq.s32.totalorder %s25, 0
    %p317 = por %p315, %p316
    %p318 = scmp.ne.s32.totalorder %s306, %s307
    %p319 = scmp.eq.s32.totalorder %s26, 1
    %p320 = por %p318, %p319
    %p322 = scmp.ne.s32.totalorder %s307, %s321
    %p323 = scmp.eq.s32.totalorder %s26, 0
    %p324 = por %p322, %p323
    %s326 = sadd.s32 %s325, 1
    %p329 = scmp.eq.s32.totalorder %s20, 1
    %p330 = scmp.ne.s32.totalorder %s325, %s327
    %p331 = scmp.eq.s32.totalorder %s20, 0
    %p332 = por %p330, %p331
    %p333 = scmp.ne.s32.totalorder %s325, %s327
    %p334 = scmp.eq.s32.totalorder %s25, 1
    %p335 = por %p333, %p334
    %p336 = scmp.ne.s32.totalorder %s327, %s328
    %p337 = scmp.eq.s32.totalorder %s25, 0
    %p338 = por %p336, %p337
    %p339 = scmp.ne.s32.totalorder %s327, %s328
    %p340 = scmp.eq.s32.totalorder %s26, 1
    %p341 = por %p339, %p340
    %p343 = scmp.ne.s32.totalorder %s328, %s342
    %p344 = scmp.eq.s32.totalorder %s26, 0
    %p345 = por %p343, %p344
    %s346 = ssub.s32 %s27, %s39
    %s347 = ssub.s32 %s28, %s35
    %s348 = sor.u32 %s346, %s347
    %p349 = scmp.eq.s32.totalorder %s348, 0
    %s351 = sadd.s32 %s350, 1
    %s352 = scalar_select %p349, %s350, %s351
    %p355 = pneg %p349
    %p356 = scmp.eq.s32.totalorder %s20, 1
    %p357 = por %p355, %p356
    %p358 = scmp.ne.s32.totalorder %s350, %s353
    %p359 = scmp.eq.s32.totalorder %s20, 0
    %p360 = por %p358, %p359
    %p361 = scmp.ne.s32.totalorder %s350, %s353
    %p362 = scmp.eq.s32.totalorder %s25, 1
    %p363 = por %p361, %p362
    %p364 = scmp.ne.s32.totalorder %s353, %s354
    %p365 = scmp.eq.s32.totalorder %s25, 0
    %p366 = por %p364, %p365
    %p367 = scmp.ne.s32.totalorder %s353, %s354
    %p368 = scmp.eq.s32.totalorder %s26, 1
    %p369 = por %p367, %p368
    %p371 = scmp.ne.s32.totalorder %s354, %s370
    %p372 = scmp.eq.s32.totalorder %s26, 0
    %p373 = por %p371, %p372
    %p374 = scmp.le.s32.totalorder 1, %s20
    %p375 = scmp.lt.s32.totalorder %s20, 3
    %p376 = pnand %p374, %p375
    %p377 = pneg %p376
    // Predicated region
    $region9: #{decoder_forward.3} parent=5 // pred_check
      _
    $region10: #{decoder_forward.3} parent=5 // pred_check_branch
      %379 = sbr.rel (%p376) target = $region12
    $region11: #{decoder_forward.3} parent=5 // pred_region
      %s380 = ssub.s32 %s20, 1
      // Predicated region
      $region13: #{decoder_forward.3} parent=11 // pred_check
        %p381 = pneg %p107
      $region14: #{decoder_forward.3} parent=11 // pred_check_branch
        %383 = sbr.rel (%p381) target = $region16
      $region15: #{decoder_forward.3} parent=11 // pred_region
        _
      $region16: #{decoder_forward.3} parent=11 // pred_fallthru
        _
      // Predicated region
      $region17: #{decoder_forward.3} parent=11 // pred_check
        %p384 = pneg %p128
      $region18: #{decoder_forward.3} parent=11 // pred_check_branch
        %386 = sbr.rel (%p384) target = $region20
      $region19: #{decoder_forward.3} parent=11 // pred_region
        _
      $region20: #{decoder_forward.3} parent=11 // pred_fallthru
        _
      // Predicated region
      $region21: #{decoder_forward.3} parent=11 // pred_check
        %p387 = pneg %p149
      $region22: #{decoder_forward.3} parent=11 // pred_check_branch
        %389 = sbr.rel (%p387) target = $region24
      $region23: #{decoder_forward.3} parent=11 // pred_region
        _
      $region24: #{decoder_forward.3} parent=11 // pred_fallthru
        _
      // Predicated region
      $region25: #{decoder_forward.3} parent=11 // pred_check
        %p390 = pneg %p170
      $region26: #{decoder_forward.3} parent=11 // pred_check_branch
        %392 = sbr.rel (%p390) target = $region28
      $region27: #{decoder_forward.3} parent=11 // pred_region
        _
      $region28: #{decoder_forward.3} parent=11 // pred_fallthru
        _
      // Predicated region
      $region29: #{decoder_forward.3} parent=11 // pred_check
        %p393 = pneg %p191
      $region30: #{decoder_forward.3} parent=11 // pred_check_branch
        %395 = sbr.rel (%p393) target = $region32
      $region31: #{decoder_forward.3} parent=11 // pred_region
        _
      $region32: #{decoder_forward.3} parent=11 // pred_fallthru
        _
      // Predicated region
      $region33: #{decoder_forward.3} parent=11 // pred_check
        %p396 = pneg %p212
      $region34: #{decoder_forward.3} parent=11 // pred_check_branch
        %398 = sbr.rel (%p396) target = $region36
      $region35: #{decoder_forward.3} parent=11 // pred_region
        _
      $region36: #{decoder_forward.3} parent=11 // pred_fallthru
        _
      // Predicated region
      $region37: #{decoder_forward.3} parent=11 // pred_check
        %p399 = pneg %p233
      $region38: #{decoder_forward.3} parent=11 // pred_check_branch
        %401 = sbr.rel (%p399) target = $region40
      $region39: #{decoder_forward.3} parent=11 // pred_region
        _
      $region40: #{decoder_forward.3} parent=11 // pred_fallthru
        _
      // Predicated region
      $region41: #{decoder_forward.3} parent=11 // pred_check
        %p402 = pneg %p254
      $region42: #{decoder_forward.3} parent=11 // pred_check_branch
        %404 = sbr.rel (%p402) target = $region44
      $region43: #{decoder_forward.3} parent=11 // pred_region
        _
      $region44: #{decoder_forward.3} parent=11 // pred_fallthru
        _
      // Predicated region
      $region45: #{decoder_forward.3} parent=11 // pred_check
        %p405 = pneg %p275
      $region46: #{decoder_forward.3} parent=11 // pred_check_branch
        %407 = sbr.rel (%p405) target = $region48
      $region47: #{decoder_forward.3} parent=11 // pred_region
        _
      $region48: #{decoder_forward.3} parent=11 // pred_fallthru
        _
      // Predicated region
      $region49: #{decoder_forward.3} parent=11 // pred_check
        %p408 = pneg %p296
      $region50: #{decoder_forward.3} parent=11 // pred_check_branch
        %410 = sbr.rel (%p408) target = $region52
      $region51: #{decoder_forward.3} parent=11 // pred_region
        _
      $region52: #{decoder_forward.3} parent=11 // pred_fallthru
        _
      // Predicated region
      $region53: #{decoder_forward.3} parent=11 // pred_check
        %p411 = pneg %p317
      $region54: #{decoder_forward.3} parent=11 // pred_check_branch
        %413 = sbr.rel (%p411) target = $region56
      $region55: #{decoder_forward.3} parent=11 // pred_region
        _
      $region56: #{decoder_forward.3} parent=11 // pred_fallthru
        _
      // Predicated region
      $region57: #{decoder_forward.3} parent=11 // pred_check
        %p414 = pneg %p338
      $region58: #{decoder_forward.3} parent=11 // pred_check_branch
        %416 = sbr.rel (%p414) target = $region60
      $region59: #{decoder_forward.3} parent=11 // pred_region
        _
      $region60: #{decoder_forward.3} parent=11 // pred_fallthru
        _
    $region12: #{decoder_forward.3} parent=5 // pred_fallthru
      _
    %p417 = scmp.lt.s32.totalorder %s20, 2
    // Predicated region
    $region61: #{decoder_forward.3} parent=5 // pred_check
      %p418 = pneg %p417
    $region62: #{decoder_forward.3} parent=5 // pred_check_branch
      %420 = sbr.rel (%p418) target = $region64
    $region63: #{decoder_forward.3} parent=5 // pred_region
      // Predicated region
      $region65: #{decoder_forward.3} parent=63 // pred_check
        %p421 = pneg %p52
      $region66: #{decoder_forward.3} parent=63 // pred_check_branch
        %423 = sbr.rel (%p421) target = $region68
      $region67: #{decoder_forward.3} parent=63 // pred_region
        %p424 = scmp.lt.s32.totalorder %s27, 1
        %s425 = scalar_select %p424, %s27, 1
        %s426 = smul.addr %s425, 2
        %s427 = smul.addr %s426, 8
        %s428 = scalar_lea.vmem %s0, %s427
      $region68: #{decoder_forward.3} parent=63 // pred_fallthru
        _
      // Predicated region
      $region69: #{decoder_forward.3} parent=63 // pred_check
        %p429 = pneg %p80
      $region70: #{decoder_forward.3} parent=63 // pred_check_branch
        %431 = sbr.rel (%p429) target = $region72
      $region71: #{decoder_forward.3} parent=63 // pred_region
        %s432 = smul.u32 2, %s28
        %p433 = scmp.lt.s32.totalorder %s27, 1
        %s434 = scalar_select %p433, %s27, 1
        %p435 = scmp.lt.s32.totalorder %s432, 1
        %s436 = scalar_select %p435, %s432, 1
        %s437 = smul.addr %s434, 2
        %s438 = sadd.s32 %s436, %s437
        %s439 = smul.addr %s438, 8
        %s440 = scalar_lea.vmem %s1, %s439
        %s441 = smul.u32 2, %s28
      $region72: #{decoder_forward.3} parent=63 // pred_fallthru
        _
    $region64: #{decoder_forward.3} parent=5 // pred_fallthru
      _
    %p442 = scmp.le.s32.totalorder 1, %s20
    %p443 = scmp.lt.s32.totalorder %s20, 3
    %p444 = pnand %p442, %p443
    %p445 = pneg %p444
    // Predicated region
    $region73: #{decoder_forward.3} parent=5 // pred_check
      _
    $region74: #{decoder_forward.3} parent=5 // pred_check_branch
      %447 = sbr.rel (%p444) target = $region76
    $region75: #{decoder_forward.3} parent=5 // pred_region
      %s448 = ssub.s32 %s20, 1
      %p449 = scmp.lt.s32.totalorder %s29, 1
      %s450 = scalar_select %p449, %s29, 1
      %s451 = smul.addr %s450, 2
      %s452 = smul.addr %s451, 8
      %s453 = scalar_lea.vmem %s0, %s452
      %p454 = pneg %p58
      %p455 = pneg %p55
      %s456 = smul.u32 2, %s30
      %p457 = scmp.lt.s32.totalorder %s29, 1
      %s458 = scalar_select %p457, %s29, 1
      %p459 = scmp.lt.s32.totalorder %s456, 1
      %s460 = scalar_select %p459, %s456, 1
      %s461 = smul.addr %s458, 2
      %s462 = sadd.s32 %s460, %s461
      %s463 = smul.addr %s462, 8
      %s464 = scalar_lea.vmem %s1, %s463
      %p465 = pneg %p86
      %p466 = pneg %p83
      %p467 = pneg %p107
      %p468 = pneg %p104
      %p469 = pneg %p128
      %p470 = pneg %p125
      %p471 = pneg %p149
      %p472 = pneg %p146
      %p473 = pneg %p170
      %p474 = pneg %p167
      %p475 = pneg %p191
      %p476 = pneg %p188
      %p477 = pneg %p212
      %p478 = pneg %p209
      %p479 = pneg %p233
      %p480 = pneg %p230
      %p481 = pneg %p254
      %p482 = pneg %p251
      %p483 = pneg %p275
      %p484 = pneg %p272
      %p485 = pneg %p296
      %p486 = pneg %p293
      %p487 = pneg %p317
      %p488 = pneg %p314
      %p489 = pneg %p338
      %p490 = pneg %p335
      %p491 = pneg %p366
      %p492 = pneg %p363
      %s493 = smul.u32 2, %s30
      %p494 = scmp.lt.s32.totalorder %s29, 1
      %s495 = scalar_select %p494, %s29, 1
      %p496 = scmp.lt.s32.totalorder %s493, 1
      %s497 = scalar_select %p496, %s493, 1
      %s498 = smul.addr %s495, 2
      %s499 = sadd.s32 %s497, %s498
      %s500 = smul.addr %s499, 8
      %s501 = scalar_lea.vmem %s14, %s500
      %p502 = scmp.lt.s32.totalorder %s29, 1
      %s503 = scalar_select %p502, %s29, 1
      %s504 = smul.addr %s503, 2
      %s505 = smul.addr %s504, 8
      %s506 = scalar_lea.vmem %s0, %s505
      %s507 = smul.u32 2, %s30
      %p508 = scmp.lt.s32.totalorder %s29, 1
      %s509 = scalar_select %p508, %s29, 1
      %p510 = scmp.lt.s32.totalorder %s507, 1
      %s511 = scalar_select %p510, %s507, 1
      %s512 = smul.addr %s509, 2
      %s513 = sadd.s32 %s511, %s512
      %s514 = smul.addr %s513, 8
      %s515 = scalar_lea.vmem %s1, %s514
      %s516 = smul.u32 2, %s30
      %s517 = smul.u32 2, %s30
      %p518 = scmp.lt.s32.totalorder %s29, 1
      %s519 = scalar_select %p518, %s29, 1
      %p520 = scmp.lt.s32.totalorder %s517, 1
      %s521 = scalar_select %p520, %s517, 1
      %s522 = smul.addr %s519, 2
      %s523 = sadd.s32 %s521, %s522
      %s524 = smul.addr %s523, 8
      %s525 = scalar_lea.vmem %s14, %s524
      %s526 = smul.u32 2, %s30
      %p528 = scmp.eq.s32.totalorder %s30, 0
      // Predicated region
      $region77: #{decoder_forward.3} parent=75 // pred_check
        %p529 = pneg %p528
      $region78: #{decoder_forward.3} parent=75 // pred_check_branch
        %531 = sbr.rel (%p529) target = $region80
      $region79: #{decoder_forward.3} parent=75 // pred_region
        %v532 = vld [vmem:[%s506] sm:$0xff]
        %v533 = vld [vmem:[%s506 + $0x8] sm:$0xff]
        %v534 = vld [vmem:[%s2] sm:$0x1]
        %v535 = vld [vmem:[%s3] sm:$0x1]
        %vm536 = vcmask 523264
        %v537 = vsel %vm536, %v532, 0.0
        %538 = vadd.xlane.f32.xlu0 %v537
        %v539 = vpop.xlane.xlu0 %538
        %v540 = vsel %vm536, %v533, 0.0
        %541 = vadd.xlane.f32.xlu0 %v540
        %v542 = vpop.xlane.xlu0 %541
        %v543 = vrcp.pop 64.0
        %v544 = vmul.f32 %v539, %v543
        %v545 = vmul.f32 %v542, %v543
        %v546 = vsub.f32 %v532, %v544
        %v547 = vsub.f32 %v533, %v545
        %v548 = vmul.f32 %v546, %v546
        %v549 = vmul.f32 %v547, %v547
        %v550 = vsel %vm536, %v548, 0.0
        %551 = vadd.xlane.f32.xlu0 %v550
        %v552 = vpop.xlane.xlu0 %551
        %v553 = vsel %vm536, %v549, 0.0
        %554 = vadd.xlane.f32.xlu0 %v553
        %v555 = vpop.xlane.xlu0 %554
        %v556 = vmul.f32 %v552, %v543
        %v557 = vmul.f32 %v555, %v543
        %v558 = vadd.f32 %v556, 1e-06
        %v559 = vadd.f32 %v557, 1e-06
        %v560 = vrsqrt.pop %v558
        %v561 = vrsqrt.pop %v559
        %v562 = vmul.f32 %v546, %v560
        %v563 = vmul.f32 %v547, %v561
        %v565 = vlaneseq
        %v566 = vshrl.u32 %v565, 7
        %v567 = vsub.s32 0, %v566
        %v568 = vrot.slane %v534, %v567
        %v570 = vmul.f32 %v562, %v568
        %v571 = vmul.f32 %v563, %v568
        %v573 = vlaneseq
        %v574 = vshrl.u32 %v573, 7
        %v575 = vsub.s32 0, %v574
        %v576 = vrot.slane %v535, %v575
        %v578 = vadd.f32 %v570, %v576
        %v579 = vadd.f32 %v571, %v576
        %v580 = vpack.c.bf16 %v579, %v578
        %v581 = vld [vmem:[%s4] sm:$0xff]
        %v582 = vld [vmem:[%s4 + $0x8] sm:$0xff]
        %v583 = vld [vmem:[%s4 + $0x10] sm:$0xff]
        %v584 = vld [vmem:[%s4 + $0x18] sm:$0xff]
        %v585 = vld [vmem:[%s4 + $0x20] sm:$0xff]
        %v586 = vld [vmem:[%s4 + $0x28] sm:$0xff]
        %v587 = vld [vmem:[%s4 + $0x30] sm:$0xff]
        %v588 = vld [vmem:[%s4 + $0x38] sm:$0xff]
        %v589 = vld [vmem:[%s5] sm:$0x3]
        %v591 = vlaneseq
        %v592 = vshrl.u32 %v591, 7
        %v593 = vsub.s32 0, %v592
        %v594 = vrot.slane %v589, %v593
        %v595 = vlaneseq
        %v596 = vshrl.u32 %v595, 7
        %v597 = vsub.s32 1, %v596
        %v598 = vrot.slane %v589, %v597
        %v609 = vunpack.c.l.b16 %v581
        %v610 = vunpack.c.h.b16 %v581
        %v611 = vunpack.c.l.b16 %v582
        %v612 = vunpack.c.h.b16 %v582
        %v613 = vunpack.c.l.b16 %v583
        %v614 = vunpack.c.h.b16 %v583
        %v615 = vunpack.c.l.b16 %v584
        %v616 = vunpack.c.h.b16 %v584
        %v617 = vunpack.c.l.b16 %v585
        %v618 = vunpack.c.h.b16 %v585
        %v619 = vunpack.c.l.b16 %v586
        %v620 = vunpack.c.h.b16 %v586
        %v621 = vunpack.c.l.b16 %v587
        %v622 = vunpack.c.h.b16 %v587
        %v623 = vunpack.c.l.b16 %v588
        %v624 = vunpack.c.h.b16 %v588
        %v625 = vpack.c.b16 %v611, %v609
        %v626 = vpack.c.b16 %v612, %v610
        %v627 = vpack.c.b16 %v615, %v613
        %v628 = vpack.c.b16 %v616, %v614
        %v629 = vpack.c.b16 %v619, %v617
        %v630 = vpack.c.b16 %v620, %v618
        %v631 = vpack.c.b16 %v623, %v621
        %v632 = vpack.c.b16 %v624, %v622
        %v642 = vsel %vm536, %v580, 0
        %644 = vmatprep.subr.bf16.mxu0 %v626
        %645 = vmatpush1.bf16.msra.mxu0 %v625
        %646 = vmatprep.subr.bf16.mxu0 %v628
        %647 = vmatpush1.bf16.msra.mxu0 %v627
        %648 = vmatprep.subr.bf16.mxu0 %v630
        %649 = vmatpush1.bf16.msra.mxu0 %v629
        %650 = vmatprep.subr.bf16.mxu0 %v632
        %651 = vmatpush1.bf16.msra.mxu0 %v631
        %652 = vmatprep.subr.bf16.mxu0 0
        %653 = vmatpush1.bf16.msra.mxu0 0
        %654 = vmatprep.subr.bf16.mxu0 0
        %655 = vmatpush1.bf16.msra.mxu0 0
        %656 = vmatprep.subr.bf16.mxu0 0
        %657 = vmatpush1.bf16.msra.mxu0 0
        %658 = vmatprep.subr.bf16.mxu0 0
        %659 = vmatpush1.bf16.msra.mxu0 0
        %660 = vmatprep.subr.bf16.mxu0 0
        %661 = vmatpush1.bf16.msra.mxu0 0
        %662 = vmatprep.subr.bf16.mxu0 0
        %663 = vmatpush1.bf16.msra.mxu0 0
        %664 = vmatprep.subr.bf16.mxu0 0
        %665 = vmatpush1.bf16.msra.mxu0 0
        %666 = vmatprep.subr.bf16.mxu0 0
        %667 = vmatpush1.bf16.msra.mxu0 0
        %668 = vmatprep.subr.bf16.mxu0 0
        %669 = vmatpush1.bf16.msra.mxu0 0
        %670 = vmatprep.subr.bf16.mxu0 0
        %671 = vmatpush1.bf16.msra.mxu0 0
        %672 = vmatprep.subr.bf16.mxu0 0
        %673 = vmatpush1.bf16.msra.mxu0 0
        %674 = vmatprep.subr.bf16.mxu0 0
        %675 = vmatpush1.bf16.msra.mxu0 0
        %676 = vmatprep.mubr.bf16.mxu0 0
        %677 = vmatmul.mubr.bf16.gmra.mrb[0].mxu0 %v642
        %v678 = vpop.f32.mrb[0].mxu0
        %v679 = vadd.f32 %v594, %v678
        %v680 = vpop.f32.mrb[0].mxu0
        %v681 = vadd.f32 %v598, %v680
        %v682 = vpop.f32.mrb[0].mxu0
        %v683 = vadd.f32 %v594, %v682
        %v684 = vpop.f32.mrb[0].mxu0
        %v685 = vadd.f32 %v598, %v684
        %686 = vdwg.mxu0
        %v687 = vmul.f32 %v679, 0.25
        %v688 = vmul.f32 %v683, 0.25
        %v689 = vpack.c.bf16 %v688, %v687
        %690 = vst.msk [vmem:[#allocation2] sm:$0xff] %vm536, %v689
        %v691 = vpack.c.bf16 %v683, %v679
        %693 = vrot.lane.b32.xlu0 %v691, 64
        %v694 = vpop.permute.xlu0 %693
        %696 = vst.msk [vmem:[#allocation3] sm:$0xff] %vm536, %v694
        %v697 = vpack.c.bf16 %v685, %v681
        %698 = vst.msk [vmem:[#allocation4] sm:$0xff] %vm536, %v697
      $region80: #{decoder_forward.3} parent=75 // pred_fallthru
        _
      %s699 = smul.u32 %s30, 16
      %s700 = sshra.s32 %s699, 4
      %s701 = sand.u32 %s699, 15
      %s702 = smul.addr %s700, 8
      %s703 = scalar_lea.vmem [#allocation2], %s702
      %v704 = vld [vmem:[%s703] sm:$0xff]
      %v705 = vld [vmem:[#allocation3] sm:$0xff]
      %v706 = vld [vmem:[#allocation4] sm:$0xff]
      %vm707 = vcmask 130048
      %v709 = vsel %vm707, %v704, 0
      %v712 = vsel %vm707, %v705, 0
      %714 = vmatprep.subr.bf16.mxu0 0
      %715 = vmatpush1.bf16.xpose.msra.mxu0 %v712
      %716 = vmatprep.subr.bf16.mxu0 0
      %717 = vmatpush1.bf16.xpose.msra.mxu0 0
      %718 = vmatprep.subr.bf16.mxu0 0
      %719 = vmatpush1.bf16.xpose.msra.mxu0 0
      %720 = vmatprep.subr.bf16.mxu0 0
      %721 = vmatpush1.bf16.xpose.msra.mxu0 0
      %722 = vmatprep.subr.bf16.mxu0 0
      %723 = vmatpush1.bf16.xpose.msra.mxu0 0
      %724 = vmatprep.subr.bf16.mxu0 0
      %725 = vmatpush1.bf16.xpose.msra.mxu0 0
      %726 = vmatprep.subr.bf16.mxu0 0
      %727 = vmatpush1.bf16.xpose.msra.mxu0 0
      %728 = vmatprep.subr.bf16.mxu0 0
      %729 = vmatpush1.bf16.xpose.msra.mxu0 0
      %730 = vmatprep.subr.bf16.mxu0 0
      %731 = vmatpush1.bf16.xpose.msra.mxu0 0
      %732 = vmatprep.subr.bf16.mxu0 0
      %733 = vmatpush1.bf16.xpose.msra.mxu0 0
      %734 = vmatprep.subr.bf16.mxu0 0
      %735 = vmatpush1.bf16.xpose.msra.mxu0 0
      %736 = vmatprep.subr.bf16.mxu0 0
      %737 = vmatpush1.bf16.xpose.msra.mxu0 0
      %738 = vmatprep.subr.bf16.mxu0 0
      %739 = vmatpush1.bf16.xpose.msra.mxu0 0
      %740 = vmatprep.subr.bf16.mxu0 0
      %741 = vmatpush1.bf16.xpose.msra.mxu0 0
      %742 = vmatprep.subr.bf16.mxu0 0
      %743 = vmatpush1.bf16.xpose.msra.mxu0 0
      %744 = vmatprep.subr.bf16.mxu0 0
      %745 = vmatpush1.bf16.xpose.msra.mxu0 0
      %746 = vmatprep.mubr.bf16.mxu0 0
      %747 = vmatmul.mubr.bf16.gmra.mrb[0].mxu0 %v709
      %v748 = vpop.f32.mrb[0].mxu0
      %v749 = vadd.f32 0.0, %v748
      %v750 = vpop.f32.mrb[0].mxu0
      %v751 = vpop.f32.mrb[0].mxu0
      %v752 = vadd.f32 0.0, %v751
      %v753 = vpop.f32.mrb[0].mxu0
      %754 = vdwg.mxu0
      %v755 = vsel %vm707, %v749, -inf
      %756 = vmax.xlane.f32.xlu0 %v755
      %v757 = vpop.xlane.xlu0 %756
      %v758 = vsel %vm707, %v752, -inf
      %759 = vmax.xlane.f32.xlu0 %v758
      %v760 = vpop.xlane.xlu0 %759
      %v761 = vsub.f32 %v749, %v757
      %v762 = vsub.f32 %v752, %v760
      %v763 = vmul.f32 %v761, 1.442695
      %v764 = vpow.pop %v763
      %v765 = vmul.f32 %v762, 1.442695
      %v766 = vpow.pop %v765
      %v767 = vsel %vm707, %v764, 0.0
      %768 = vadd.xlane.f32.xlu0 %v767
      %v769 = vpop.xlane.xlu0 %768
      %v770 = vsel %vm707, %v766, 0.0
      %771 = vadd.xlane.f32.xlu0 %v770
      %v772 = vpop.xlane.xlu0 %771
      %v773 = vrcp.pop %v769
      %v774 = vrcp.pop %v772
      %v775 = vmul.f32 %v764, %v773
      %v776 = vmul.f32 %v766, %v774
      %v777 = vpack.c.bf16 %v776, %v775
      %v779 = vsel %vm707, %v777, 0
      %781 = vmatprep.subr.bf16.mxu0 0
      %782 = vmatpush1.bf16.msra.mxu0 %v706
      %783 = vmatprep.subr.bf16.mxu0 0
      %784 = vmatpush1.bf16.msra.mxu0 0
      %785 = vmatprep.subr.bf16.mxu0 0
      %786 = vmatpush1.bf16.msra.mxu0 0
      %787 = vmatprep.subr.bf16.mxu0 0
      %788 = vmatpush1.bf16.msra.mxu0 0
      %789 = vmatprep.subr.bf16.mxu0 0
      %790 = vmatpush1.bf16.msra.mxu0 0
      %791 = vmatprep.subr.bf16.mxu0 0
      %792 = vmatpush1.bf16.msra.mxu0 0
      %793 = vmatprep.subr.bf16.mxu0 0
      %794 = vmatpush1.bf16.msra.mxu0 0
      %795 = vmatprep.subr.bf16.mxu0 0
      %796 = vmatpush1.bf16.msra.mxu0 0
      %797 = vmatprep.subr.bf16.mxu0 0
      %798 = vmatpush1.bf16.msra.mxu0 0
      %799 = vmatprep.subr.bf16.mxu0 0
      %800 = vmatpush1.bf16.msra.mxu0 0
      %801 = vmatprep.subr.bf16.mxu0 0
      %802 = vmatpush1.bf16.msra.mxu0 0
      %803 = vmatprep.subr.bf16.mxu0 0
      %804 = vmatpush1.bf16.msra.mxu0 0
      %805 = vmatprep.subr.bf16.mxu0 0
      %806 = vmatpush1.bf16.msra.mxu0 0
      %807 = vmatprep.subr.bf16.mxu0 0
      %808 = vmatpush1.bf16.msra.mxu0 0
      %809 = vmatprep.subr.bf16.mxu0 0
      %810 = vmatpush1.bf16.msra.mxu0 0
      %811 = vmatprep.subr.bf16.mxu0 0
      %812 = vmatpush1.bf16.msra.mxu0 0
      %813 = vmatprep.mubr.bf16.mxu0 0
      %814 = vmatmul.mubr.bf16.gmra.mrb[0].mxu0 %v779
      %v815 = vpop.f32.mrb[0].mxu0
      %v816 = vadd.f32 0.0, %v815
      %v817 = vpop.f32.mrb[0].mxu0
      %v818 = vpop.f32.mrb[0].mxu0
      %v819 = vadd.f32 0.0, %v818
      %v820 = vpop.f32.mrb[0].mxu0
      %821 = vdwg.mxu0
      %823 = vrot.lane.b32.xlu0 %v704, 112
      %v824 = vpop.permute.xlu0 %823
      %826 = vrot.lane.b32.xlu0 %v705, 112
      %v827 = vpop.permute.xlu0 %826
      %v829 = vsel %vm707, %v824, 0
      %v832 = vsel %vm707, %v827, 0
      %834 = vmatprep.subr.bf16.mxu0 0
      %835 = vmatpush1.bf16.xpose.msra.mxu0 %v832
      %836 = vmatprep.subr.bf16.mxu0 0
      %837 = vmatpush1.bf16.xpose.msra.mxu0 0
      %838 = vmatprep.subr.bf16.mxu0 0
      %839 = vmatpush1.bf16.xpose.msra.mxu0 0
      %840 = vmatprep.subr.bf16.mxu0 0
      %841 = vmatpush1.bf16.xpose.msra.mxu0 0
      %842 = vmatprep.subr.bf16.mxu0 0
      %843 = vmatpush1.bf16.xpose.msra.mxu0 0
      %844 = vmatprep.subr.bf16.mxu0 0
      %845 = vmatpush1.bf16.xpose.msra.mxu0 0
      %846 = vmatprep.subr.bf16.mxu0 0
      %847 = vmatpush1.bf16.xpose.msra.mxu0 0
      %848 = vmatprep.subr.bf16.mxu0 0
      %849 = vmatpush1.bf16.xpose.msra.mxu0 0
      %850 = vmatprep.subr.bf16.mxu0 0
      %851 = vmatpush1.bf16.xpose.msra.mxu0 0
      %852 = vmatprep.subr.bf16.mxu0 0
      %853 = vmatpush1.bf16.xpose.msra.mxu0 0
      %854 = vmatprep.subr.bf16.mxu0 0
      %855 = vmatpush1.bf16.xpose.msra.mxu0 0
      %856 = vmatprep.subr.bf16.mxu0 0
      %857 = vmatpush1.bf16.xpose.msra.mxu0 0
      %858 = vmatprep.subr.bf16.mxu0 0
      %859 = vmatpush1.bf16.xpose.msra.mxu0 0
      %860 = vmatprep.subr.bf16.mxu0 0
      %861 = vmatpush1.bf16.xpose.msra.mxu0 0
      %862 = vmatprep.subr.bf16.mxu0 0
      %863 = vmatpush1.bf16.xpose.msra.mxu0 0
      %864 = vmatprep.subr.bf16.mxu0 0
      %865 = vmatpush1.bf16.xpose.msra.mxu0 0
      %866 = vmatprep.mubr.bf16.mxu0 0
      %867 = vmatmul.mubr.bf16.gmra.mrb[0].mxu0 %v829
      %v868 = vpop.f32.mrb[0].mxu0
      %v869 = vadd.f32 0.0, %v868
      %v870 = vpop.f32.mrb[0].mxu0
      %v871 = vpop.f32.mrb[0].mxu0
      %v872 = vadd.f32 0.0, %v871
      %v873 = vpop.f32.mrb[0].mxu0
      %874 = vdwg.mxu0
      %v875 = vsel %vm707, %v869, -inf
      %876 = vmax.xlane.f32.xlu0 %v875
      %v877 = vpop.xlane.xlu0 %876
      %v878 = vsel %vm707, %v872, -inf
      %879 = vmax.xlane.f32.xlu0 %v878
      %v880 = vpop.xlane.xlu0 %879
      %v881 = vsub.f32 %v869, %v877
      %v882 = vsub.f32 %v872, %v880
      %v883 = vmul.f32 %v881, 1.442695
      %v884 = vpow.pop %v883
      %v885 = vmul.f32 %v882, 1.442695
      %v886 = vpow.pop %v885
      %v887 = vsel %vm707, %v884, 0.0
      %888 = vadd.xlane.f32.xlu0 %v887
      %v889 = vpop.xlane.xlu0 %888
      %v890 = vsel %vm707, %v886, 0.0
      %891 = vadd.xlane.f32.xlu0 %v890
      %v892 = vpop.xlane.xlu0 %891
      %v893 = vrcp.pop %v889
      %v894 = vrcp.pop %v892
      %v895 = vmul.f32 %v884, %v893
      %v896 = vmul.f32 %v886, %v894
      %v897 = vpack.c.bf16 %v896, %v895
      %899 = vrot.lane.b32.xlu0 %v706, 112
      %v900 = vpop.permute.xlu0 %899
      %v903 = vsel %vm707, %v897, 0
      %905 = vmatprep.subr.bf16.mxu0 0
      %906 = vmatpush1.bf16.msra.mxu0 %v900
      %907 = vmatprep.subr.bf16.mxu0 0
      %908 = vmatpush1.bf16.msra.mxu0 0
      %909 = vmatprep.subr.bf16.mxu0 0
      %910 = vmatpush1.bf16.msra.mxu0 0
      %911 = vmatprep.subr.bf16.mxu0 0
      %912 = vmatpush1.bf16.msra.mxu0 0
      %913 = vmatprep.subr.bf16.mxu0 0
      %914 = vmatpush1.bf16.msra.mxu0 0
      %915 = vmatprep.subr.bf16.mxu0 0
      %916 = vmatpush1.bf16.msra.mxu0 0
      %917 = vmatprep.subr.bf16.mxu0 0
      %918 = vmatpush1.bf16.msra.mxu0 0
      %919 = vmatprep.subr.bf16.mxu0 0
      %920 = vmatpush1.bf16.msra.mxu0 0
      %921 = vmatprep.subr.bf16.mxu0 0
      %922 = vmatpush1.bf16.msra.mxu0 0
      %923 = vmatprep.subr.bf16.mxu0 0
      %924 = vmatpush1.bf16.msra.mxu0 0
      %925 = vmatprep.subr.bf16.mxu0 0
      %926 = vmatpush1.bf16.msra.mxu0 0
      %927 = vmatprep.subr.bf16.mxu0 0
      %928 = vmatpush1.bf16.msra.mxu0 0
      %929 = vmatprep.subr.bf16.mxu0 0
      %930 = vmatpush1.bf16.msra.mxu0 0
      %931 = vmatprep.subr.bf16.mxu0 0
      %932 = vmatpush1.bf16.msra.mxu0 0
      %933 = vmatprep.subr.bf16.mxu0 0
      %934 = vmatpush1.bf16.msra.mxu0 0
      %935 = vmatprep.subr.bf16.mxu0 0
      %936 = vmatpush1.bf16.msra.mxu0 0
      %937 = vmatprep.mubr.bf16.mxu0 0
      %938 = vmatmul.mubr.bf16.gmra.mrb[0].mxu0 %v903
      %v939 = vpop.f32.mrb[0].mxu0
      %v940 = vadd.f32 0.0, %v939
      %v941 = vpop.f32.mrb[0].mxu0
      %v942 = vpop.f32.mrb[0].mxu0
      %v943 = vadd.f32 0.0, %v942
      %v944 = vpop.f32.mrb[0].mxu0
      %945 = vdwg.mxu0
      %946 = vrot.lane.b32.xlu0 %v704, 96
      %v947 = vpop.permute.xlu0 %946
      %948 = vrot.lane.b32.xlu0 %v705, 96
      %v949 = vpop.permute.xlu0 %948
      %v951 = vsel %vm707, %v947, 0
      %v954 = vsel %vm707, %v949, 0
      %956 = vmatprep.subr.bf16.mxu0 0
      %957 = vmatpush1.bf16.xpose.msra.mxu0 %v954
      %958 = vmatprep.subr.bf16.mxu0 0
      %959 = vmatpush1.bf16.xpose.msra.mxu0 0
      %960 = vmatprep.subr.bf16.mxu0 0
      %961 = vmatpush1.bf16.xpose.msra.mxu0 0
      %962 = vmatprep.subr.bf16.mxu0 0
      %963 = vmatpush1.bf16.xpose.msra.mxu0 0
      %964 = vmatprep.subr.bf16.mxu0 0
      %965 = vmatpush1.bf16.xpose.msra.mxu0 0
      %966 = vmatprep.subr.bf16.mxu0 0
      %967 = vmatpush1.bf16.xpose.msra.mxu0 0
      %968 = vmatprep.subr.bf16.mxu0 0
      %969 = vmatpush1.bf16.xpose.msra.mxu0 0
      %970 = vmatprep.subr.bf16.mxu0 0
      %971 = vmatpush1.bf16.xpose.msra.mxu0 0
      %972 = vmatprep.subr.bf16.mxu0 0
      %973 = vmatpush1.bf16.xpose.msra.mxu0 0
      %974 = vmatprep.subr.bf16.mxu0 0
      %975 = vmatpush1.bf16.xpose.msra.mxu0 0
      %976 = vmatprep.subr.bf16.mxu0 0
      %977 = vmatpush1.bf16.xpose.msra.mxu0 0
      %978 = vmatprep.subr.bf16.mxu0 0
      %979 = vmatpush1.bf16.xpose.msra.mxu0 0
      %980 = vmatprep.subr.bf16.mxu0 0
      %981 = vmatpush1.bf16.xpose.msra.mxu0 0
      %982 = vmatprep.subr.bf16.mxu0 0
      %983 = vmatpush1.bf16.xpose.msra.mxu0 0
      %984 = vmatprep.subr.bf16.mxu0 0
      %985 = vmatpush1.bf16.xpose.msra.mxu0 0
      %986 = vmatprep.subr.bf16.mxu0 0
      %987 = vmatpush1.bf16.xpose.msra.mxu0 0
      %988 = vmatprep.mubr.bf16.mxu0 0
      %989 = vmatmul.mubr.bf16.gmra.mrb[0].mxu0 %v951
      %v990 = vpop.f32.mrb[0].mxu0
      %v991 = vadd.f32 0.0, %v990
      %v992 = vpop.f32.mrb[0].mxu0
      %v993 = vpop.f32.mrb[0].mxu0
      %v994 = vadd.f32 0.0, %v993
      %v995 = vpop.f32.mrb[0].mxu0
      %996 = vdwg.mxu0
      %v997 = vsel %vm707, %v991, -inf
      %998 = vmax.xlane.f32.xlu0 %v997
      %v999 = vpop.xlane.xlu0 %998
      %v1000 = vsel %vm707, %v994, -inf
      %1001 = vmax.xlane.f32.xlu0 %v1000
      %v1002 = vpop.xlane.xlu0 %1001
      %v1003 = vsub.f32 %v991, %v999
      %v1004 = vsub.f32 %v994, %v1002
      %v1005 = vmul.f32 %v1003, 1.442695
      %v1006 = vpow.pop %v1005
      %v1007 = vmul.f32 %v1004, 1.442695
      %v1008 = vpow.pop %v1007
      %v1009 = vsel %vm707, %v1006, 0.0
      %1010 = vadd.xlane.f32.xlu0 %v1009
      %v1011 = vpop.xlane.xlu0 %1010
      %v1012 = vsel %vm707, %v1008, 0.0
      %1013 = vadd.xlane.f32.xlu0 %v1012
      %v1014 = vpop.xlane.xlu0 %1013
      %v1015 = vrcp.pop %v1011
      %v1016 = vrcp.pop %v1014
      %v1017 = vmul.f32 %v1006, %v1015
      %v1018 = vmul.f32 %v1008, %v1016
      %v1019 = vpack.c.bf16 %v1018, %v1017
      %1020 = vrot.lane.b32.xlu0 %v706, 96
      %v1021 = vpop.permute.xlu0 %1020
      %v1024 = vsel %vm707, %v1019, 0
      %1026 = vmatprep.subr.bf16.mxu0 0
      %1027 = vmatpush1.bf16.msra.mxu0 %v1021
      %1028 = vmatprep.subr.bf16.mxu0 0
      %1029 = vmatpush1.bf16.msra.mxu0 0
      %1030 = vmatprep.subr.bf16.mxu0 0
      %1031 = vmatpush1.bf16.msra.mxu0 0
      %1032 = vmatprep.subr.bf16.mxu0 0
      %1033 = vmatpush1.bf16.msra.mxu0 0
      %1034 = vmatprep.subr.bf16.mxu0 0
      %1035 = vmatpush1.bf16.msra.mxu0 0
      %1036 = vmatprep.subr.bf16.mxu0 0
      %1037 = vmatpush1.bf16.msra.mxu0 0
      %1038 = vmatprep.subr.bf16.mxu0 0
      %1039 = vmatpush1.bf16.msra.mxu0 0
      %1040 = vmatprep.subr.bf16.mxu0 0
      %1041 = vmatpush1.bf16.msra.mxu0 0
      %1042 = vmatprep.subr.bf16.mxu0 0
      %1043 = vmatpush1.bf16.msra.mxu0 0
      %1044 = vmatprep.subr.bf16.mxu0 0
      %1045 = vmatpush1.bf16.msra.mxu0 0
      %1046 = vmatprep.subr.bf16.mxu0 0
      %1047 = vmatpush1.bf16.msra.mxu0 0
      %1048 = vmatprep.subr.bf16.mxu0 0
      %1049 = vmatpush1.bf16.msra.mxu0 0
      %1050 = vmatprep.subr.bf16.mxu0 0
      %1051 = vmatpush1.bf16.msra.mxu0 0
      %1052 = vmatprep.subr.bf16.mxu0 0
      %1053 = vmatpush1.bf16.msra.mxu0 0
      %1054 = vmatprep.subr.bf16.mxu0 0
      %1055 = vmatpush1.bf16.msra.mxu0 0
      %1056 = vmatprep.subr.bf16.mxu0 0
      %1057 = vmatpush1.bf16.msra.mxu0 0
      %1058 = vmatprep.mubr.bf16.mxu0 0
      %1059 = vmatmul.mubr.bf16.gmra.mrb[0].mxu0 %v1024
      %v1060 = vpop.f32.mrb[0].mxu0
      %v1061 = vadd.f32 0.0, %v1060
      %v1062 = vpop.f32.mrb[0].mxu0
      %v1063 = vpop.f32.mrb[0].mxu0
      %v1064 = vadd.f32 0.0, %v1063
      %v1065 = vpop.f32.mrb[0].mxu0
      %1066 = vdwg.mxu0
      %1067 = vrot.lane.b32.xlu0 %v704, 80
      %v1068 = vpop.permute.xlu0 %1067
      %1069 = vrot.lane.b32.xlu0 %v705, 80
      %v1070 = vpop.permute.xlu0 %1069
      %v1072 = vsel %vm707, %v1068, 0
      %v1075 = vsel %vm707, %v1070, 0
      %1077 = vmatprep.subr.bf16.mxu0 0
      %1078 = vmatpush1.bf16.xpose.msra.mxu0 %v1075
      %1079 = vmatprep.subr.bf16.mxu0 0
      %1080 = vmatpush1.bf16.xpose.msra.mxu0 0
      %1081 = vmatprep.subr.bf16.mxu0 0
      %1082 = vmatpush1.bf16.xpose.msra.mxu0 0
      %1083 = vmatprep.subr.bf16.mxu0 0
      %1084 = vmatpush1.bf16.xpose.msra.mxu0 0
      %1085 = vmatprep.subr.bf16.mxu0 0
      %1086 = vmatpush1.bf16.xpose.msra.mxu0 0
      %1087 = vmatprep.subr.bf16.mxu0 0
      %1088 = vmatpush1.bf16.xpose.msra.mxu0 0
      %1089 = vmatprep.subr.bf16.mxu0 0
      %1090 = vmatpush1.bf16.xpose.msra.mxu0 0
      %1091 = vmatprep.subr.bf16.mxu0 0
      %1092 = vmatpush1.bf16.xpose.msra.mxu0 0
      %1093 = vmatprep.subr.bf16.mxu0 0
      %1094 = vmatpush1.bf16.xpose.msra.mxu0 0
      %1095 = vmatprep.subr.bf16.mxu0 0
      %1096 = vmatpush1.bf16.xpose.msra.mxu0 0
      %1097 = vmatprep.subr.bf16.mxu0 0
      %1098 = vmatpush1.bf16.xpose.msra.mxu0 0
      %1099 = vmatprep.subr.bf16.mxu0 0
      %1100 = vmatpush1.bf16.xpose.msra.mxu0 0
      %1101 = vmatprep.subr.bf16.mxu0 0
      %1102 = vmatpush1.bf16.xpose.msra.mxu0 0
      %1103 = vmatprep.subr.bf16.mxu0 0
      %1104 = vmatpush1.bf16.xpose.msra.mxu0 0
      %1105 = vmatprep.subr.bf16.mxu0 0
      %1106 = vmatpush1.bf16.xpose.msra.mxu0 0
      %1107 = vmatprep.subr.bf16.mxu0 0
      %1108 = vmatpush1.bf16.xpose.msra.mxu0 0
      %1109 = vmatprep.mubr.bf16.mxu0 0
      %1110 = vmatmul.mubr.bf16.gmra.mrb[0].mxu0 %v1072
      %v1111 = vpop.f32.mrb[0].mxu0
      %v1112 = vadd.f32 0.0, %v1111
      %v1113 = vpop.f32.mrb[0].mxu0
      %v1114 = vpop.f32.mrb[0].mxu0
      %v1115 = vadd.f32 0.0, %v1114
      %v1116 = vpop.f32.mrb[0].mxu0
      %1117 = vdwg.mxu0
      %v1118 = vsel %vm707, %v1112, -inf
      %1119 = vmax.xlane.f32.xlu0 %v1118
      %v1120 = vpop.xlane.xlu0 %1119
      %v1121 = vsel %vm707, %v1115, -inf
      %1122 = vmax.xlane.f32.xlu0 %v1121
      %v1123 = vpop.xlane.xlu0 %1122
      %v1124 = vsub.f32 %v1112, %v1120
      %v1125 = vsub.f32 %v1115, %v1123
      %v1126 = vmul.f32 %v1124, 1.442695
      %v1127 = vpow.pop %v1126
      %v1128 = vmul.f32 %v1125, 1.442695
      %v1129 = vpow.pop %v1128
      %v1130 = vsel %vm707, %v1127, 0.0
      %1131 = vadd.xlane.f32.xlu0 %v1130
      %v1132 = vpop.xlane.xlu0 %1131
      %v1133 = vsel %vm707, %v1129, 0.0
      %1134 = vadd.xlane.f32.xlu0 %v1133
      %v1135 = vpop.xlane.xlu0 %1134
      %v1136 = vrcp.pop %v1132
      %v1137 = vrcp.pop %v1135
      %v1138 = vmul.f32 %v1127, %v1136
      %v1139 = vmul.f32 %v1129, %v1137
      %v1140 = vpack.c.bf16 %v1139, %v1138
      %1141 = vrot.lane.b32.xlu0 %v706, 80
      %v1142 = vpop.permute.xlu0 %1141
      %v1145 = vsel %vm707, %v1140, 0
      %1147 = vmatprep.subr.bf16.mxu0 0
      %1148 = vmatpush1.bf16.msra.mxu0 %v1142
      %1149 = vmatprep.subr.bf16.mxu0 0
      %1150 = vmatpush1.bf16.msra.mxu0 0
      %1151 = vmatprep.subr.bf16.mxu0 0
      %1152 = vmatpush1.bf16.msra.mxu0 0
      %1153 = vmatprep.subr.bf16.mxu0 0
      %1154 = vmatpush1.bf16.msra.mxu0 0
      %1155 = vmatprep.subr.bf16.mxu0 0
      %1156 = vmatpush1.bf16.msra.mxu0 0
      %1157 = vmatprep.subr.bf16.mxu0 0
      %1158 = vmatpush1.bf16.msra.mxu0 0
      %1159 = vmatprep.subr.bf16.mxu0 0
      %1160 = vmatpush1.bf16.msra.mxu0 0
      %1161 = vmatprep.subr.bf16.mxu0 0
      %1162 = vmatpush1.bf16.msra.mxu0 0
      %1163 = vmatprep.subr.bf16.mxu0 0
      %1164 = vmatpush1.bf16.msra.mxu0 0
      %1165 = vmatprep.subr.bf16.mxu0 0
      %1166 = vmatpush1.bf16.msra.mxu0 0
      %1167 = vmatprep.subr.bf16.mxu0 0
      %1168 = vmatpush1.bf16.msra.mxu0 0
      %1169 = vmatprep.subr.bf16.mxu0 0
      %1170 = vmatpush1.bf16.msra.mxu0 0
      %1171 = vmatprep.subr.bf16.mxu0 0
      %1172 = vmatpush1.bf16.msra.mxu0 0
      %1173 = vmatprep.subr.bf16.mxu0 0
      %1174 = vmatpush1.bf16.msra.mxu0 0
      %1175 = vmatprep.subr.bf16.mxu0 0
      %1176 = vmatpush1.bf16.msra.mxu0 0
      %1177 = vmatprep.subr.bf16.mxu0 0
      %1178 = vmatpush1.bf16.msra.mxu0 0
      %1179 = vmatprep.mubr.bf16.mxu0 0
      %1180 = vmatmul.mubr.bf16.gmra.mrb[0].mxu0 %v1145
      %v1181 = vpop.f32.mrb[0].mxu0
      %v1182 = vadd.f32 0.0, %v1181
      %v1183 = vpop.f32.mrb[0].mxu0
      %v1184 = vpop.f32.mrb[0].mxu0
      %v1185 = vadd.f32 0.0, %v1184
      %v1186 = vpop.f32.mrb[0].mxu0
      %1187 = vdwg.mxu0
      %1190 = vrot.lane.b32.xlu0 %v940, 16
      %v1191 = vpop.permute.xlu0 %1190
      %1192 = vrot.lane.b32.xlu0 %v943, 16
      %v1193 = vpop.permute.xlu0 %1192
      %1198 = vrot.lane.b32.xlu0 %v1061, 32
      %v1199 = vpop.permute.xlu0 %1198
      %1200 = vrot.lane.b32.xlu0 %v1064, 32
      %v1201 = vpop.permute.xlu0 %1200
      %1206 = vrot.lane.b32.xlu0 %v1182, 48
      %v1207 = vpop.permute.xlu0 %1206
      %1208 = vrot.lane.b32.xlu0 %v1185, 48
      %v1209 = vpop.permute.xlu0 %1208
      %v1212 = vsel %vm707, %v816, %v1191
      %v1213 = vsel %vm707, %v819, %v1193
      %vm1214 = vcmask 261120
      %v1215 = vsel %vm1214, %v1212, %v1199
      %v1216 = vsel %vm1214, %v1213, %v1201
      %vm1217 = vcmask 392192
      %v1218 = vsel %vm1217, %v1215, %v1207
      %v1219 = vsel %vm1217, %v1216, %v1209
      %v1220 = vpack.c.bf16 %v1219, %v1218
      %v1221 = vld [vmem:[%s6] sm:$0xf]
      %v1222 = vld [vmem:[%s6 + $0x4] sm:$0xf]
      %v1223 = vld [vmem:[%s6 + $0x8] sm:$0xf]
      %v1224 = vld [vmem:[%s6 + $0xc] sm:$0xf]
      %v1225 = vld [vmem:[%s6 + $0x10] sm:$0xf]
      %v1226 = vld [vmem:[%s6 + $0x14] sm:$0xf]
      %v1227 = vld [vmem:[%s6 + $0x18] sm:$0xf]
      %v1228 = vld [vmem:[%s6 + $0x1c] sm:$0xf]
      %v1229 = vld [vmem:[%s7] sm:$0x1]
      %v1231 = vlaneseq
      %v1232 = vshrl.u32 %v1231, 7
      %v1233 = vsub.s32 0, %v1232
      %v1234 = vrot.slane %v1229, %v1233
      %v1244 = vunpack.c.l.b16 %v1221
      %v1245 = vunpack.c.l.b16 %v1222
      %v1246 = vunpack.c.l.b16 %v1223
      %v1247 = vunpack.c.l.b16 %v1224
      %v1248 = vunpack.c.l.b16 %v1225
      %v1249 = vunpack.c.l.b16 %v1226
      %v1250 = vunpack.c.l.b16 %v1227
      %v1251 = vunpack.c.l.b16 %v1228
      %v1252 = vpack.c.b16 %v1245, %v1244
      %v1253 = vpack.c.b16 %v1247, %v1246
      %v1254 = vpack.c.b16 %v1249, %v1248
      %v1255 = vpack.c.b16 %v1251, %v1250
      %vm1260 = vcmask 523264
      %v1262 = vsel %vm1260, %v1220, 0
      %1264 = vmatprep.subr.bf16.mxu0 0
      %1265 = vmatpush1.bf16.msra.mxu0 %v1252
      %1266 = vmatprep.subr.bf16.mxu0 0
      %1267 = vmatpush1.bf16.msra.mxu0 %v1253
      %1268 = vmatprep.subr.bf16.mxu0 0
      %1269 = vmatpush1.bf16.msra.mxu0 %v1254
      %1270 = vmatprep.subr.bf16.mxu0 0
      %1271 = vmatpush1.bf16.msra.mxu0 %v1255
      %1272 = vmatprep.subr.bf16.mxu0 0
      %1273 = vmatpush1.bf16.msra.mxu0 0
      %1274 = vmatprep.subr.bf16.mxu0 0
      %1275 = vmatpush1.bf16.msra.mxu0 0
      %1276 = vmatprep.subr.bf16.mxu0 0
      %1277 = vmatpush1.bf16.msra.mxu0 0
      %1278 = vmatprep.subr.bf16.mxu0 0
      %1279 = vmatpush1.bf16.msra.mxu0 0
      %1280 = vmatprep.subr.bf16.mxu0 0
      %1281 = vmatpush1.bf16.msra.mxu0 0
      %1282 = vmatprep.subr.bf16.mxu0 0
      %1283 = vmatpush1.bf16.msra.mxu0 0
      %1284 = vmatprep.subr.bf16.mxu0 0
      %1285 = vmatpush1.bf16.msra.mxu0 0
      %1286 = vmatprep.subr.bf16.mxu0 0
      %1287 = vmatpush1.bf16.msra.mxu0 0
      %1288 = vmatprep.subr.bf16.mxu0 0
      %1289 = vmatpush1.bf16.msra.mxu0 0
      %1290 = vmatprep.subr.bf16.mxu0 0
      %1291 = vmatpush1.bf16.msra.mxu0 0
      %1292 = vmatprep.subr.bf16.mxu0 0
      %1293 = vmatpush1.bf16.msra.mxu0 0
      %1294 = vmatprep.subr.bf16.mxu0 0
      %1295 = vmatpush1.bf16.msra.mxu0 0
      %1296 = vmatprep.mubr.bf16.mxu0 0
      %1297 = vmatmul.mubr.bf16.gmra.mrb[0].mxu0 %v1262
      %v1298 = vpop.f32.mrb[0].mxu0
      %v1299 = vadd.f32 %v1234, %v1298
      %v1300 = vpop.f32.mrb[0].mxu0
      %v1301 = vpop.f32.mrb[0].mxu0
      %v1302 = vadd.f32 %v1234, %v1301
      %v1303 = vpop.f32.mrb[0].mxu0
      %1304 = vdwg.mxu0
      %v1305 = vld [vmem:[%s515] sm:$0xff]
      %v1306 = vld [vmem:[%s515 + $0x8] sm:$0xff]
      %v1307 = vadd.f32 %v1305, %v1299
      %v1308 = vadd.f32 %v1306, %v1302
      %v1309 = vld [vmem:[%s8] sm:$0x1]
      %v1310 = vld [vmem:[%s9] sm:$0x1]
      %v1311 = vsel %vm1260, %v1307, 0.0
      %1312 = vadd.xlane.f32.xlu0 %v1311
      %v1313 = vpop.xlane.xlu0 %1312
      %v1314 = vsel %vm1260, %v1308, 0.0
      %1315 = vadd.xlane.f32.xlu0 %v1314
      %v1316 = vpop.xlane.xlu0 %1315
      %v1317 = vrcp.pop 64.0
      %v1318 = vmul.f32 %v1313, %v1317
      %v1319 = vmul.f32 %v1316, %v1317
      %v1320 = vsub.f32 %v1307, %v1318
      %v1321 = vsub.f32 %v1308, %v1319
      %v1322 = vmul.f32 %v1320, %v1320
      %v1323 = vmul.f32 %v1321, %v1321
      %v1324 = vsel %vm1260, %v1322, 0.0
      %1325 = vadd.xlane.f32.xlu0 %v1324
      %v1326 = vpop.xlane.xlu0 %1325
      %v1327 = vsel %vm1260, %v1323, 0.0
      %1328 = vadd.xlane.f32.xlu0 %v1327
      %v1329 = vpop.xlane.xlu0 %1328
      %v1330 = vmul.f32 %v1326, %v1317
      %v1331 = vmul.f32 %v1329, %v1317
      %v1332 = vadd.f32 %v1330, 1e-06
      %v1333 = vadd.f32 %v1331, 1e-06
      %v1334 = vrsqrt.pop %v1332
      %v1335 = vrsqrt.pop %v1333
      %v1336 = vmul.f32 %v1320, %v1334
      %v1337 = vmul.f32 %v1321, %v1335
      %v1339 = vlaneseq
      %v1340 = vshrl.u32 %v1339, 7
      %v1341 = vsub.s32 0, %v1340
      %v1342 = vrot.slane %v1309, %v1341
      %v1344 = vmul.f32 %v1336, %v1342
      %v1345 = vmul.f32 %v1337, %v1342
      %v1347 = vlaneseq
      %v1348 = vshrl.u32 %v1347, 7
      %v1349 = vsub.s32 0, %v1348
      %v1350 = vrot.slane %v1310, %v1349
      %v1352 = vadd.f32 %v1344, %v1350
      %v1353 = vadd.f32 %v1345, %v1350
      %v1354 = vpack.c.bf16 %v1353, %v1352
      %v1355 = vld [vmem:[%s10] sm:$0xff]
      %v1356 = vld [vmem:[%s10 + $0x8] sm:$0xff]
      %v1357 = vld [vmem:[%s10 + $0x10] sm:$0xff]
      %v1358 = vld [vmem:[%s10 + $0x18] sm:$0xff]
      %v1359 = vld [vmem:[%s10 + $0x20] sm:$0xff]
      %v1360 = vld [vmem:[%s10 + $0x28] sm:$0xff]
      %v1361 = vld [vmem:[%s10 + $0x30] sm:$0xff]
      %v1362 = vld [vmem:[%s10 + $0x38] sm:$0xff]
      %v1363 = vld [vmem:[%s11] sm:$0x3]
      %v1365 = vlaneseq
      %v1366 = vshrl.u32 %v1365, 7
      %v1367 = vsub.s32 0, %v1366
      %v1368 = vrot.slane %v1363, %v1367
      %v1369 = vlaneseq
      %v1370 = vshrl.u32 %v1369, 7
      %v1371 = vsub.s32 1, %v1370
      %v1372 = vrot.slane %v1363, %v1371
      %v1383 = vunpack.c.l.b16 %v1355
      %v1384 = vunpack.c.h.b16 %v1355
      %v1385 = vunpack.c.l.b16 %v1356
      %v1386 = vunpack.c.h.b16 %v1356
      %v1387 = vunpack.c.l.b16 %v1357
      %v1388 = vunpack.c.h.b16 %v1357
      %v1389 = vunpack.c.l.b16 %v1358
      %v1390 = vunpack.c.h.b16 %v1358
      %v1391 = vunpack.c.l.b16 %v1359
      %v1392 = vunpack.c.h.b16 %v1359
      %v1393 = vunpack.c.l.b16 %v1360
      %v1394 = vunpack.c.h.b16 %v1360
      %v1395 = vunpack.c.l.b16 %v1361
      %v1396 = vunpack.c.h.b16 %v1361
      %v1397 = vunpack.c.l.b16 %v1362
      %v1398 = vunpack.c.h.b16 %v1362
      %v1399 = vpack.c.b16 %v1385, %v1383
      %v1400 = vpack.c.b16 %v1386, %v1384
      %v1401 = vpack.c.b16 %v1389, %v1387
      %v1402 = vpack.c.b16 %v1390, %v1388
      %v1403 = vpack.c.b16 %v1393, %v1391
      %v1404 = vpack.c.b16 %v1394, %v1392
      %v1405 = vpack.c.b16 %v1397, %v1395
      %v1406 = vpack.c.b16 %v1398, %v1396
      %v1416 = vsel %vm1260, %v1354, 0
      %1418 = vmatprep.subr.bf16.mxu0 %v1400
      %1419 = vmatpush1.bf16.msra.mxu0 %v1399
      %1420 = vmatprep.subr.bf16.mxu0 %v1402
      %1421 = vmatpush1.bf16.msra.mxu0 %v1401
      %1422 = vmatprep.subr.bf16.mxu0 %v1404
      %1423 = vmatpush1.bf16.msra.mxu0 %v1403
      %1424 = vmatprep.subr.bf16.mxu0 %v1406
      %1425 = vmatpush1.bf16.msra.mxu0 %v1405
      %1426 = vmatprep.subr.bf16.mxu0 0
      %1427 = vmatpush1.bf16.msra.mxu0 0
      %1428 = vmatprep.subr.bf16.mxu0 0
      %1429 = vmatpush1.bf16.msra.mxu0 0
      %1430 = vmatprep.subr.bf16.mxu0 0
      %1431 = vmatpush1.bf16.msra.mxu0 0
      %1432 = vmatprep.subr.bf16.mxu0 0
      %1433 = vmatpush1.bf16.msra.mxu0 0
      %1434 = vmatprep.subr.bf16.mxu0 0
      %1435 = vmatpush1.bf16.msra.mxu0 0
      %1436 = vmatprep.subr.bf16.mxu0 0
      %1437 = vmatpush1.bf16.msra.mxu0 0
      %1438 = vmatprep.subr.bf16.mxu0 0
      %1439 = vmatpush1.bf16.msra.mxu0 0
      %1440 = vmatprep.subr.bf16.mxu0 0
      %1441 = vmatpush1.bf16.msra.mxu0 0
      %1442 = vmatprep.subr.bf16.mxu0 0
      %1443 = vmatpush1.bf16.msra.mxu0 0
      %1444 = vmatprep.subr.bf16.mxu0 0
      %1445 = vmatpush1.bf16.msra.mxu0 0
      %1446 = vmatprep.subr.bf16.mxu0 0
      %1447 = vmatpush1.bf16.msra.mxu0 0
      %1448 = vmatprep.subr.bf16.mxu0 0
      %1449 = vmatpush1.bf16.msra.mxu0 0
      %1450 = vmatprep.mubr.bf16.mxu0 0
      %1451 = vmatmul.mubr.bf16.gmra.mrb[0].mxu0 %v1416
      %v1452 = vpop.f32.mrb[0].mxu0
      %v1453 = vadd.f32 %v1368, %v1452
      %v1454 = vpop.f32.mrb[0].mxu0
      %v1455 = vadd.f32 %v1372, %v1454
      %v1456 = vpop.f32.mrb[0].mxu0
      %v1457 = vadd.f32 %v1368, %v1456
      %v1458 = vpop.f32.mrb[0].mxu0
      %v1459 = vadd.f32 %v1372, %v1458
      %1460 = vdwg.mxu0
      %v1461 = vmul.f32 %v1453, 0.5
      %v1462 = vmul.f32 %v1455, 0.5
      %v1463 = vmul.f32 %v1457, 0.5
      %v1464 = vmul.f32 %v1459, 0.5
      %v1465 = vmul.f32 %v1453, 0.044715
      %v1466 = vmul.f32 %v1455, 0.044715
      %v1467 = vmul.f32 %v1457, 0.044715
      %v1468 = vmul.f32 %v1459, 0.044715
      %v1469 = vmul.f32 %v1465, %v1453
      %v1470 = vmul.f32 %v1466, %v1455
      %v1471 = vmul.f32 %v1467, %v1457
      %v1472 = vmul.f32 %v1468, %v1459
      %v1473 = vmul.f32 %v1469, %v1453
      %v1474 = vmul.f32 %v1470, %v1455
      %v1475 = vmul.f32 %v1471, %v1457
      %v1476 = vmul.f32 %v1472, %v1459
      %v1477 = vadd.f32 %v1453, %v1473
      %v1478 = vadd.f32 %v1455, %v1474
      %v1479 = vadd.f32 %v1457, %v1475
      %v1480 = vadd.f32 %v1459, %v1476
      %v1481 = vmul.f32 %v1477, 0.7978846
      %v1482 = vmul.f32 %v1478, 0.7978846
      %v1483 = vmul.f32 %v1479, 0.7978846
      %v1484 = vmul.f32 %v1480, 0.7978846
      %v1485 = vtanh.pop %v1481
      %v1486 = vtanh.pop %v1482
      %v1487 = vtanh.pop %v1483
      %v1488 = vtanh.pop %v1484
      %v1489 = vadd.f32 %v1485, 1.0
      %v1490 = vadd.f32 %v1486, 1.0
      %v1491 = vadd.f32 %v1487, 1.0
      %v1492 = vadd.f32 %v1488, 1.0
      %v1493 = vmul.f32 %v1461, %v1489
      %v1494 = vmul.f32 %v1462, %v1490
      %v1495 = vmul.f32 %v1463, %v1491
      %v1496 = vmul.f32 %v1464, %v1492
      %v1497 = vpack.c.bf16 %v1495, %v1493
      %v1498 = vpack.c.bf16 %v1496, %v1494
      %v1499 = vld [vmem:[%s12] sm:$0xf]
      %v1500 = vld [vmem:[%s12 + $0x4] sm:$0xf]
      %v1501 = vld [vmem:[%s12 + $0x8] sm:$0xf]
      %v1502 = vld [vmem:[%s12 + $0xc] sm:$0xf]
      %v1503 = vld [vmem:[%s12 + $0x10] sm:$0xf]
      %v1504 = vld [vmem:[%s12 + $0x14] sm:$0xf]
      %v1505 = vld [vmem:[%s12 + $0x18] sm:$0xf]
      %v1506 = vld [vmem:[%s12 + $0x1c] sm:$0xf]
      %v1507 = vld [vmem:[%s12 + $0x20] sm:$0xf]
      %v1508 = vld [vmem:[%s12 + $0x24] sm:$0xf]
      %v1509 = vld [vmem:[%s12 + $0x28] sm:$0xf]
      %v1510 = vld [vmem:[%s12 + $0x2c] sm:$0xf]
      %v1511 = vld [vmem:[%s12 + $0x30] sm:$0xf]
      %v1512 = vld [vmem:[%s12 + $0x34] sm:$0xf]
      %v1513 = vld [vmem:[%s12 + $0x38] sm:$0xf]
      %v1514 = vld [vmem:[%s12 + $0x3c] sm:$0xf]
      %v1515 = vld [vmem:[%s12 + $0x40] sm:$0xf]
      %v1516 = vld [vmem:[%s12 + $0x44] sm:$0xf]
      %v1517 = vld [vmem:[%s12 + $0x48] sm:$0xf]
      %v1518 = vld [vmem:[%s12 + $0x4c] sm:$0xf]
      %v1519 = vld [vmem:[%s12 + $0x50] sm:$0xf]
      %v1520 = vld [vmem:[%s12 + $0x54] sm:$0xf]
      %v1521 = vld [vmem:[%s12 + $0x58] sm:$0xf]
      %v1522 = vld [vmem:[%s12 + $0x5c] sm:$0xf]
      %v1523 = vld [vmem:[%s12 + $0x60] sm:$0xf]
      %v1524 = vld [vmem:[%s12 + $0x64] sm:$0xf]
      %v1525 = vld [vmem:[%s12 + $0x68] sm:$0xf]
      %v1526 = vld [vmem:[%s12 + $0x6c] sm:$0xf]
      %v1527 = vld [vmem:[%s12 + $0x70] sm:$0xf]
      %v1528 = vld [vmem:[%s12 + $0x74] sm:$0xf]
      %v1529 = vld [vmem:[%s12 + $0x78] sm:$0xf]
      %v1530 = vld [vmem:[%s12 + $0x7c] sm:$0xf]
      %v1563 = vunpack.c.l.b16 %v1499
      %v1564 = vunpack.c.l.b16 %v1500
      %v1565 = vunpack.c.l.b16 %v1501
      %v1566 = vunpack.c.l.b16 %v1502
      %v1567 = vunpack.c.l.b16 %v1503
      %v1568 = vunpack.c.l.b16 %v1504
      %v1569 = vunpack.c.l.b16 %v1505
      %v1570 = vunpack.c.l.b16 %v1506
      %v1571 = vunpack.c.l.b16 %v1507
      %v1572 = vunpack.c.l.b16 %v1508
      %v1573 = vunpack.c.l.b16 %v1509
      %v1574 = vunpack.c.l.b16 %v1510
      %v1575 = vunpack.c.l.b16 %v1511
      %v1576 = vunpack.c.l.b16 %v1512
      %v1577 = vunpack.c.l.b16 %v1513
      %v1578 = vunpack.c.l.b16 %v1514
      %v1579 = vunpack.c.l.b16 %v1515
      %v1580 = vunpack.c.l.b16 %v1516
      %v1581 = vunpack.c.l.b16 %v1517
      %v1582 = vunpack.c.l.b16 %v1518
      %v1583 = vunpack.c.l.b16 %v1519
      %v1584 = vunpack.c.l.b16 %v1520
      %v1585 = vunpack.c.l.b16 %v1521
      %v1586 = vunpack.c.l.b16 %v1522
      %v1587 = vunpack.c.l.b16 %v1523
      %v1588 = vunpack.c.l.b16 %v1524
      %v1589 = vunpack.c.l.b16 %v1525
      %v1590 = vunpack.c.l.b16 %v1526
      %v1591 = vunpack.c.l.b16 %v1527
      %v1592 = vunpack.c.l.b16 %v1528
      %v1593 = vunpack.c.l.b16 %v1529
      %v1594 = vunpack.c.l.b16 %v1530
      %v1595 = vpack.c.b16 %v1564, %v1563
      %v1596 = vpack.c.b16 %v1566, %v1565
      %v1597 = vpack.c.b16 %v1568, %v1567
      %v1598 = vpack.c.b16 %v1570, %v1569
      %v1599 = vpack.c.b16 %v1572, %v1571
      %v1600 = vpack.c.b16 %v1574, %v1573
      %v1601 = vpack.c.b16 %v1576, %v1575
      %v1602 = vpack.c.b16 %v1578, %v1577
      %v1603 = vpack.c.b16 %v1580, %v1579
      %v1604 = vpack.c.b16 %v1582, %v1581
      %v1605 = vpack.c.b16 %v1584, %v1583
      %v1606 = vpack.c.b16 %v1586, %v1585
      %v1607 = vpack.c.b16 %v1588, %v1587
      %v1608 = vpack.c.b16 %v1590, %v1589
      %v1609 = vpack.c.b16 %v1592, %v1591
      %v1610 = vpack.c.b16 %v1594, %v1593
      %1627 = vmatprep.subr.bf16.mxu0 0
      %1628 = vmatpush1.bf16.msra.mxu0 %v1595
      %1629 = vmatprep.subr.bf16.mxu0 0
      %1630 = vmatpush1.bf16.msra.mxu0 %v1596
      %1631 = vmatprep.subr.bf16.mxu0 0
      %1632 = vmatpush1.bf16.msra.mxu0 %v1597
      %1633 = vmatprep.subr.bf16.mxu0 0
      %1634 = vmatpush1.bf16.msra.mxu0 %v1598
      %1635 = vmatprep.subr.bf16.mxu0 0
      %1636 = vmatpush1.bf16.msra.mxu0 %v1599
      %1637 = vmatprep.subr.bf16.mxu0 0
      %1638 = vmatpush1.bf16.msra.mxu0 %v1600
      %1639 = vmatprep.subr.bf16.mxu0 0
      %1640 = vmatpush1.bf16.msra.mxu0 %v1601
      %1641 = vmatprep.subr.bf16.mxu0 0
      %1642 = vmatpush1.bf16.msra.mxu0 %v1602
      %1643 = vmatprep.subr.bf16.mxu0 0
      %1644 = vmatpush1.bf16.msra.mxu0 %v1603
      %1645 = vmatprep.subr.bf16.mxu0 0
      %1646 = vmatpush1.bf16.msra.mxu0 %v1604
      %1647 = vmatprep.subr.bf16.mxu0 0
      %1648 = vmatpush1.bf16.msra.mxu0 %v1605
      %1649 = vmatprep.subr.bf16.mxu0 0
      %1650 = vmatpush1.bf16.msra.mxu0 %v1606
      %1651 = vmatprep.subr.bf16.mxu0 0
      %1652 = vmatpush1.bf16.msra.mxu0 %v1607
      %1653 = vmatprep.subr.bf16.mxu0 0
      %1654 = vmatpush1.bf16.msra.mxu0 %v1608
      %1655 = vmatprep.subr.bf16.mxu0 0
      %1656 = vmatpush1.bf16.msra.mxu0 %v1609
      %1657 = vmatprep.subr.bf16.mxu0 0
      %1658 = vmatpush1.bf16.msra.mxu0 %v1610
      %1659 = vmatprep.mubr.bf16.mxu0 %v1498
      %1660 = vmatmul.mubr.bf16.gmra.mrb[0].mxu0 %v1497
      %v1661 = vpop.f32.mrb[0].mxu0
      %v1662 = vadd.f32 0.0, %v1661
      %v1663 = vpop.f32.mrb[0].mxu0
      %v1664 = vpop.f32.mrb[0].mxu0
      %v1665 = vadd.f32 0.0, %v1664
      %v1666 = vpop.f32.mrb[0].mxu0
      %1667 = vdwg.mxu0
      %v1668 = vadd.f32 %v1307, %v1662
      %v1669 = vadd.f32 %v1308, %v1665
      %v1670 = vld [vmem:[%s13] sm:$0x1]
      %v1672 = vlaneseq
      %v1673 = vshrl.u32 %v1672, 7
      %v1674 = vsub.s32 0, %v1673
      %v1675 = vrot.slane %v1670, %v1674
      %v1677 = vadd.f32 %v1668, %v1675
      %v1678 = vadd.f32 %v1669, %v1675
      %1679 = vst.msk [vmem:[%s525] sm:$0xff] %vm1260, %v1677
      %1680 = vst.msk [vmem:[%s525 + $0x8] sm:$0xff] %vm1260, %v1678
      %s1681 = smul.u32 2, %s30
      %p1682 = scmp.lt.s32.totalorder %s29, 1
      %s1683 = scalar_select %p1682, %s29, 1
      %p1684 = scmp.lt.s32.totalorder %s1681, 1
      %s1685 = scalar_select %p1684, %s1681, 1
      %s1686 = smul.addr %s1683, 2
      %s1687 = sadd.s32 %s1685, %s1686
      %s1688 = smul.addr %s1687, 8
      %s1689 = scalar_lea.vmem %s14, %s1688
      // Predicated region
      $region81: #{decoder_forward.3} parent=75 // pred_check
        %p1690 = pneg %p363
      $region82: #{decoder_forward.3} parent=75 // pred_check_branch
        %1692 = sbr.rel (%p1690) target = $region84
      $region83: #{decoder_forward.3} parent=75 // pred_region
        %s1693 = smul.u32 2, %s30
      $region84: #{decoder_forward.3} parent=75 // pred_fallthru
        _
    $region76: #{decoder_forward.3} parent=5 // pred_fallthru
      _
    %p1694 = scmp.le.s32.totalorder 2, %s20
    // Predicated region
    $region85: #{decoder_forward.3} parent=5 // pred_check
      %p1695 = pneg %p1694
    $region86: #{decoder_forward.3} parent=5 // pred_check_branch
      %1697 = sbr.rel (%p1695) target = $region88
    $region87: #{decoder_forward.3} parent=5 // pred_region
      %s1698 = ssub.s32 %s20, 2
      // Predicated region
      $region89: #{decoder_forward.3} parent=87 // pred_check
        %p1699 = pneg %p369
      $region90: #{decoder_forward.3} parent=87 // pred_check_branch
        %1701 = sbr.rel (%p1699) target = $region92
      $region91: #{decoder_forward.3} parent=87 // pred_region
        %s1702 = smul.u32 2, %s32
        %p1703 = scmp.lt.s32.totalorder %s31, 1
        %s1704 = scalar_select %p1703, %s31, 1
        %p1705 = scmp.lt.s32.totalorder %s1702, 1
        %s1706 = scalar_select %p1705, %s1702, 1
        %s1707 = smul.addr %s1704, 2
        %s1708 = sadd.s32 %s1706, %s1707
        %s1709 = smul.addr %s1708, 8
        %s1710 = scalar_lea.vmem %s14, %s1709
      $region92: #{decoder_forward.3} parent=87 // pred_fallthru
        _
    $region88: #{decoder_forward.3} parent=5 // pred_fallthru
      _
  $region6: #{decoder_forward.3} parent=0 // loop_footer
    %s24 = sadd.s32 1, %s20
  $region7: #{decoder_forward.3} parent=0 // loop_footer_branch
    %19 = sbr.rel target = $region3
  $region8: #{decoder_forward.3} parent=0 // loop_exit
    _

</llo_original>
